<compile_context>
chip_gen: v7x
topology: tpu7x:2x2x1
jax: 0.10.0
libtpu: 0.0.40
codegen_flags: <defaults>
</compile_context>

<pallas_src>
import math

import numpy as np
import jax
import jax.numpy as jnp
from jax.experimental import pallas as pl
from jax.experimental.pallas import tpu as pltpu


# ---------------------------------------------------------------------------
# Constant stencil matrices (host-side, tiny, resident in VMEM across the grid)
# ---------------------------------------------------------------------------
def _central_diff_matrix(n, interior_denom):
    """Left-multiplication matrix M so that (M @ v) is the torch-style diff:
       out[0] = v[1]-v[0]; out[i] = (v[i+1]-v[i-1])/interior_denom; out[-1]=v[-1]-v[-2]."""
    m = np.zeros((n, n), dtype=np.float32)
    idx = np.arange(1, n - 1)
    m[idx, idx - 1] = -1.0 / interior_denom
    m[idx, idx + 1] = 1.0 / interior_denom
    m[0, 0], m[0, 1] = -1.0, 1.0
    m[n - 1, n - 2], m[n - 1, n - 1] = -1.0, 1.0
    return m


def _avgpool3_matrix(n):
    """Right-multiplication matrix for AvgPool1d(kernel=3, stride=1, padding=1),
       count_include_pad=True (zero pad, always divide by 3)."""
    m = np.zeros((n, n), dtype=np.float32)
    i = np.arange(n)
    m[i, i] = 1.0 / 3.0
    if n > 1:
        m[i[:-1], i[:-1] + 1] = 1.0 / 3.0
        m[i[1:], i[1:] - 1] = 1.0 / 3.0
    return m


def _block_diag(a, b):
    out = np.zeros((a.shape[0] + b.shape[0], a.shape[1] + b.shape[1]), dtype=np.float32)
    out[:a.shape[0], :a.shape[1]] = a
    out[a.shape[0]:, a.shape[1]:] = b
    return out


# ---------------------------------------------------------------------------
# Kernel
# ---------------------------------------------------------------------------
def _weighted_laplacian_kernel(x_ref, wcat_ref, dt_ref, div_ref, bdte_ref, o_ref):
    bb, t, f = x_ref.shape
    x = x_ref[...].astype(jnp.float32)            # (BB, T, F)
    x2 = x.reshape(bb * t, f)                     # leading-dim merge (free)

    # ---- fused projection: [xa | feature_grad] = x2 @ [A | DFR] ------------
    # A = (Wq*scale) @ Wk^T folded on the host; DFR is the lane-axis diff.
    proj = jnp.dot(x2, wcat_ref[...], preferred_element_type=jnp.float32)   # (BB*T, 2F)
    xa = proj[:, :f].reshape(bb, t, f)                                      # (BB, T, F)
    feature_grad = proj[:, f:].reshape(bb, t, f)                            # (BB, T, F)

    # ---- temporal attention: scores[b,i,j] = (x[b,i] @ A) . x[b,j] ---------
    scores = jax.lax.dot_general(xa, x, (((2,), (2,)), ((0,), (0,))),
                                 preferred_element_type=jnp.float32)        # (BB,T,T)
    s2 = scores.reshape(bb * t, t)                                          # 2-D softmax
    s2 = s2 - jnp.max(s2, axis=-1, keepdims=True)
    e = jnp.exp(s2)
    denom = jnp.sum(e, axis=-1, keepdims=True)
    inv = pl.reciprocal(denom, approx=True)       # EUP slot
    inv = inv * (2.0 - denom * inv)               # one Newton step -> ~f32 accuracy
    attn2 = e * inv                               # (BB*T, T)

    # ---- weighted temporal gradient: attn @ (DT @ x) == (attn @ DT) @ x ----
    ad = jnp.dot(attn2, dt_ref[...],
                 preferred_element_type=jnp.float32).reshape(bb, t, t)
    wtg = jax.lax.dot_general(ad, x, (((2,), (1,)), ((0,), (0,))),
                              preferred_element_type=jnp.float32)           # (BB,T,F)

    # ---- feature-importance weighting --------------------------------------
    fi = jax.nn.sigmoid(jnp.mean(jnp.abs(feature_grad), axis=1, keepdims=True))  # (BB,1,F)
    wfg = feature_grad * fi

    tg = jnp.clip(wtg, -10.0, 10.0).reshape(bb * t, f)
    fg = jnp.clip(wfg, -10.0, 10.0).reshape(bb * t, f)

    # ---- divergence ---------------------------------------------------------
    # One fused right-matmul: [tg | fg] @ blkdiag(POOL, DFR) = [tg@POOL | fg@DFR]
    cat = jnp.concatenate([tg, fg], axis=1)                                 # (BB*T, 2F)
    pd = jnp.dot(cat, div_ref[...], preferred_element_type=jnp.float32)     # (BB*T, 2F)
    pooled = pd[:, :f]                                                      # tg @ POOL
    feature_div = pd[:, f:]                                                 # fg @ DFR
    # temporal: blkdiag_b(DTE) @ pooled  (associativity: DTE @ (tg @ POOL))
    temporal_div = jnp.dot(bdte_ref[...], pooled,
                           preferred_element_type=jnp.float32)              # (BB*T, F)

    o_ref[...] = (temporal_div + feature_div).reshape(bb, t, f).astype(o_ref.dtype)


# ---------------------------------------------------------------------------
# Wrapper
# ---------------------------------------------------------------------------
def weighted_laplacian(x, wq, wk, temperature=1.0, batch_block=None):
    """x: (B, T, F) f32; wq, wk: (F, D) f32. Returns (B, T, F) f32."""
    b, t, f = x.shape
    f2, d = wq.shape
    assert f2 == f and wk.shape == (f, d)
    assert t >= 2 and f >= 2, "difference stencils need T >= 2 and F >= 2"

    # Default: whole batch in one grid step (single TC on v5e/v6e; the working
    # set is tiny).  Pass batch_block=B//2 to benchmark a 2-step grid on v7x.
    bb = b if batch_block is None else max(1, min(int(batch_block), b))
    while b % bb:
        bb -= 1

    # Host-fold of the attention projections + score scale (free, outside kernel).
    scale = 1.0 / (math.sqrt(d) * float(temperature))
    a_mat = (wq.astype(jnp.float32) * scale) @ wk.astype(jnp.float32).T      # (F,F)

    dfr = _central_diff_matrix(f, 2.0).T                                     # right-mult diff
    wcat = jnp.concatenate([a_mat, jnp.asarray(dfr)], axis=1)                # (F, 2F)
    dt = jnp.asarray(_central_diff_matrix(t, 2.0))                           # (T,T)
    div_cat = jnp.asarray(_block_diag(_avgpool3_matrix(f), dfr))             # (2F, 2F)
    bdte = jnp.asarray(np.kron(np.eye(bb, dtype=np.float32),
                               _central_diff_matrix(t, 2.0 + 1e-6)))         # (bb*T, bb*T)

    bt = b * t
    cost = pl.CostEstimate(
        flops=int(2 * bt * f * 2 * f          # x2 @ [A|DFR]
                  + 4 * b * t * t * f         # scores + (attn DT) @ x
                  + 2 * bt * t * t            # attn @ DT
                  + 2 * bt * 2 * f * 2 * f    # [tg|fg] @ blkdiag(POOL,DFR)
                  + 2 * b * bb * t * t * f    # blkdiag(DTE) @ pooled
                  + 12 * bt * f),             # elementwise
        transcendentals=int(b * t * t + b * f + b * t),
        bytes_accessed=int(4 * (2 * b * t * f + 2 * f * f + t * t
                                + 4 * f * f + (bb * t) ** 2)),
    )

    return pl.pallas_call(
        _weighted_laplacian_kernel,
        out_shape=jax.ShapeDtypeStruct((b, t, f), jnp.float32),
        grid_spec=pltpu.PrefetchScalarGridSpec(
            num_scalar_prefetch=0,
            grid=(b // bb,),
            in_specs=[
                pl.BlockSpec((bb, t, f), lambda i: (i, 0, 0)),        # x block
                pl.BlockSpec((f, 2 * f), lambda i: (0, 0)),           # [A | DFR]
                pl.BlockSpec((t, t), lambda i: (0, 0)),               # DT
                pl.BlockSpec((2 * f, 2 * f), lambda i: (0, 0)),       # blkdiag(POOL,DFR)
                pl.BlockSpec((bb * t, bb * t), lambda i: (0, 0)),     # blkdiag_b(DTE)
            ],
            out_specs=pl.BlockSpec((bb, t, f), lambda i: (i, 0, 0)),
        ),
        compiler_params=pltpu.CompilerParams(
            dimension_semantics=("parallel",)),
        cost_estimate=cost,
    )(x, wcat, dt, div_cat, bdte)


# ---------------------------------------------------------------------------
# Pure-JAX reference (mirrors the PyTorch code) for validation
# ---------------------------------------------------------------------------
def _ref_weighted_laplacian(x, wq, wk, temperature=1.0):
    d = wq.shape[1]
    q = x @ wq
    k = x @ wk
    scores = jnp.einsum("btd,bsd->bts", q, k) / (math.sqrt(d) * temperature)
    attn = jax.nn.softmax(scores, axis=-1)

    def diff(a, axis, denom):
        a = jnp.moveaxis(a, axis, 1)
        n = a.shape[1]
        interior = (a[:, 2:] - a[:, : n - 2]) / denom
        first = (a[:, 1] - a[:, 0])[:, None]
        last = (a[:, -1] - a[:, -2])[:, None]
        out = jnp.concatenate([first, interior, last], axis=1)
        return jnp.moveaxis(out, 1, axis)

    temporal_grad = diff(x, 1, 2.0)
    feature_grad = diff(x, 2, 2.0)
    wtg = jnp.einsum("bts,bsf->btf", attn, temporal_grad)
    fi = jax.nn.sigmoid(jnp.mean(jnp.abs(feature_grad), axis=1, keepdims=True))
    wfg = feature_grad * fi
    tg = jnp.clip(wtg, -10.0, 10.0)
    fg = jnp.clip(wfg, -10.0, 10.0)
    td = diff(tg, 1, 2.0 + 1e-6)
    padded = jnp.pad(td, ((0, 0), (0, 0), (1, 1)))
    td = (padded[:, :, :-2] + padded[:, :, 1:-1] + padded[:, :, 2:]) / 3.0
    fd = diff(fg, 2, 2.0)
    return td + fd


if __name__ == "__main__":
    B, T, F, D = 8, 8, 32, 16
    key = jax.random.PRNGKey(0)
    kx, kq, kk = jax.random.split(key, 3)
    x = jax.random.normal(kx, (B, T, F), jnp.float32)
    # Deterministic parameter init for the (synthetic) attention mechanism.
    wq = jax.random.normal(kq, (F, D), jnp.float32) / math.sqrt(F)
    wk = jax.random.normal(kk, (F, D), jnp.float32) / math.sqrt(F)

    out = weighted_laplacian(x, wq, wk, temperature=1.0)   # grid=(1,)
    out = jax.block_until_ready(out)

    ref = _ref_weighted_laplacian(x, wq, wk, temperature=1.0)
    assert out.shape == (B, T, F)
    assert bool(jnp.all(jnp.isfinite(out)))
    err = float(jnp.max(jnp.abs(out - ref)))
    assert bool(jnp.allclose(out, ref, atol=5e-4, rtol=5e-4)), err
    print("KERNEL_OK")
</pallas_src>

<mosaic_0001>
module attributes {stable_mosaic.version = 11 : i64} {
  func.func @_weighted_laplacian_kernel(%arg0: i32, %arg1: memref<8x8x32xf32, #tpu.memory_space<vmem>>, %arg2: memref<32x64xf32, #tpu.memory_space<vmem>>, %arg3: memref<8x8xf32, #tpu.memory_space<vmem>>, %arg4: memref<64x64xf32, #tpu.memory_space<vmem>>, %arg5: memref<64x64xf32, #tpu.memory_space<vmem>>, %arg6: memref<8x8x32xf32, #tpu.memory_space<vmem>>) attributes {dimension_semantics = [#tpu.dimension_semantics<parallel>], iteration_bounds = array<i64: 1>, scalar_prefetch = 0 : i64, scratch_operands = 0 : i64, tpu.core_type = #tpu.core_type<tc>, window_params = [{transform_indices = @transform_0, window_bounds = array<i64: 8, 8, 32>}, {pipeline_mode = #tpu.pipeline_mode<synchronous>, transform_indices = @transform_1, window_bounds = array<i64: 32, 64>}, {pipeline_mode = #tpu.pipeline_mode<synchronous>, transform_indices = @transform_2, window_bounds = array<i64: 8, 8>}, {pipeline_mode = #tpu.pipeline_mode<synchronous>, transform_indices = @transform_3, window_bounds = array<i64: 64, 64>}, {pipeline_mode = #tpu.pipeline_mode<synchronous>, transform_indices = @transform_4, window_bounds = array<i64: 64, 64>}, {transform_indices = @transform_5, window_bounds = array<i64: 8, 8, 32>}]} {
    %c0 = arith.constant 0 : index
    %c0_0 = arith.constant 0 : index
    %c0_1 = arith.constant 0 : index
    %0 = vector.load %arg1[%c0, %c0_0, %c0_1] : memref<8x8x32xf32, #tpu.memory_space<vmem>>, vector<8x8x32xf32>
    %1 = vector.shape_cast %0 : vector<8x8x32xf32> to vector<64x32xf32>
    %c0_2 = arith.constant 0 : index
    %c0_3 = arith.constant 0 : index
    %2 = vector.load %arg2[%c0_2, %c0_3] : memref<32x64xf32, #tpu.memory_space<vmem>>, vector<32x64xf32>
    %cst = arith.constant dense<0.000000e+00> : vector<64x64xf32>
    %3 = tpu.matmul %1, %2, %cst {dimension_numbers = #tpu.dot_dimension_numbers<[1], [0], [0], [1], [0, 0, 1, 1], [], []>} : vector<64x32xf32>, vector<32x64xf32>, vector<64x64xf32> -> vector<64x64xf32>
    %4 = vector.extract_strided_slice %3 {offsets = [0, 0], sizes = [64, 32], strides = [1, 1]} : vector<64x64xf32> to vector<64x32xf32>
    %5 = vector.shape_cast %4 : vector<64x32xf32> to vector<8x8x32xf32>
    %6 = vector.extract_strided_slice %3 {offsets = [0, 32], sizes = [64, 32], strides = [1, 1]} : vector<64x64xf32> to vector<64x32xf32>
    %7 = vector.shape_cast %6 : vector<64x32xf32> to vector<8x8x32xf32>
    %cst_4 = arith.constant dense<0.000000e+00> : vector<8x8x8xf32>
    %8 = tpu.matmul %5, %0, %cst_4 {dimension_numbers = #tpu.dot_dimension_numbers<[2], [2], [1], [1], [0, 0, 0, 1, 1, 1], [0], [0]>} : vector<8x8x32xf32>, vector<8x8x32xf32>, vector<8x8x8xf32> -> vector<8x8x8xf32>
    %9 = vector.shape_cast %8 : vector<8x8x8xf32> to vector<64x8xf32>
    %cst_5 = arith.constant dense<0xFF800000> : vector<64xf32>
    %10 = vector.multi_reduction <maximumf>, %9, %cst_5 [1] : vector<64x8xf32> to vector<64xf32>
    %11 = vector.shape_cast %10 : vector<64xf32> to vector<64x1xf32>
    %12 = vector.broadcast %11 : vector<64x1xf32> to vector<64x8xf32>
    %13 = arith.subf %9, %12 : vector<64x8xf32>
    %14 = math.exp %13 : vector<64x8xf32>
    %cst_6 = arith.constant dense<0.000000e+00> : vector<64xf32>
    %15 = vector.multi_reduction <add>, %14, %cst_6 [1] : vector<64x8xf32> to vector<64xf32>
    %16 = vector.shape_cast %15 : vector<64xf32> to vector<64x1xf32>
    %17 = tpu.reciprocal %16 {approx = true} : vector<64x1xf32> -> vector<64x1xf32>
    %18 = arith.mulf %16, %17 : vector<64x1xf32>
    %cst_7 = arith.constant 2.000000e+00 : f32
    %19 = vector.broadcast %cst_7 : f32 to vector<64x1xf32>
    %20 = arith.subf %19, %18 : vector<64x1xf32>
    %21 = arith.mulf %17, %20 : vector<64x1xf32>
    %22 = vector.broadcast %21 : vector<64x1xf32> to vector<64x8xf32>
    %23 = arith.mulf %14, %22 : vector<64x8xf32>
    %c0_8 = arith.constant 0 : index
    %c0_9 = arith.constant 0 : index
    %24 = vector.load %arg3[%c0_8, %c0_9] : memref<8x8xf32, #tpu.memory_space<vmem>>, vector<8x8xf32>
    %cst_10 = arith.constant dense<0.000000e+00> : vector<64x8xf32>
    %25 = tpu.matmul %23, %24, %cst_10 {dimension_numbers = #tpu.dot_dimension_numbers<[1], [0], [0], [1], [0, 0, 1, 1], [], []>} : vector<64x8xf32>, vector<8x8xf32>, vector<64x8xf32> -> vector<64x8xf32>
    %26 = vector.shape_cast %25 : vector<64x8xf32> to vector<8x8x8xf32>
    %cst_11 = arith.constant dense<0.000000e+00> : vector<8x8x32xf32>
    %27 = tpu.matmul %26, %0, %cst_11 {dimension_numbers = #tpu.dot_dimension_numbers<[2], [1], [1], [2], [0, 0, 0, 1, 1, 2], [0], [0]>} : vector<8x8x8xf32>, vector<8x8x32xf32>, vector<8x8x32xf32> -> vector<8x8x32xf32>
    %28 = math.absf %7 : vector<8x8x32xf32>
    %cst_12 = arith.constant dense<0.000000e+00> : vector<8x32xf32>
    %29 = vector.multi_reduction <add>, %28, %cst_12 [1] : vector<8x8x32xf32> to vector<8x32xf32>
    %30 = vector.shape_cast %29 : vector<8x32xf32> to vector<8x1x32xf32>
    %cst_13 = arith.constant 8.000000e+00 : f32
    %31 = vector.broadcast %cst_13 : f32 to vector<8x1x32xf32>
    %32 = arith.divf %30, %31 : vector<8x1x32xf32>
    %33 = arith.negf %32 : vector<8x1x32xf32>
    %34 = math.exp %33 : vector<8x1x32xf32>
    %cst_14 = arith.constant 1.000000e+00 : f32
    %35 = vector.broadcast %cst_14 : f32 to vector<8x1x32xf32>
    %36 = arith.addf %35, %34 : vector<8x1x32xf32>
    %37 = arith.divf %35, %36 : vector<8x1x32xf32>
    %38 = vector.broadcast %37 : vector<8x1x32xf32> to vector<8x8x32xf32>
    %39 = arith.mulf %7, %38 : vector<8x8x32xf32>
    %cst_15 = arith.constant -1.000000e+01 : f32
    %cst_16 = arith.constant 1.000000e+01 : f32
    %40 = vector.broadcast %cst_15 : f32 to vector<8x8x32xf32>
    %41 = arith.maximumf %40, %27 : vector<8x8x32xf32>
    %42 = vector.broadcast %cst_16 : f32 to vector<8x8x32xf32>
    %43 = arith.minimumf %42, %41 : vector<8x8x32xf32>
    %44 = vector.shape_cast %43 : vector<8x8x32xf32> to vector<64x32xf32>
    %cst_17 = arith.constant -1.000000e+01 : f32
    %cst_18 = arith.constant 1.000000e+01 : f32
    %45 = vector.broadcast %cst_17 : f32 to vector<8x8x32xf32>
    %46 = arith.maximumf %45, %39 : vector<8x8x32xf32>
    %47 = vector.broadcast %cst_18 : f32 to vector<8x8x32xf32>
    %48 = arith.minimumf %47, %46 : vector<8x8x32xf32>
    %49 = vector.shape_cast %48 : vector<8x8x32xf32> to vector<64x32xf32>
    %50 = tpu.concatenate %44, %49 in 1 : vector<64x32xf32>, vector<64x32xf32> -> vector<64x64xf32>
    %c0_19 = arith.constant 0 : index
    %c0_20 = arith.constant 0 : index
    %51 = vector.load %arg4[%c0_19, %c0_20] : memref<64x64xf32, #tpu.memory_space<vmem>>, vector<64x64xf32>
    %cst_21 = arith.constant dense<0.000000e+00> : vector<64x64xf32>
    %52 = tpu.matmul %50, %51, %cst_21 {dimension_numbers = #tpu.dot_dimension_numbers<[1], [0], [0], [1], [0, 0, 1, 1], [], []>} : vector<64x64xf32>, vector<64x64xf32>, vector<64x64xf32> -> vector<64x64xf32>
    %53 = vector.extract_strided_slice %52 {offsets = [0, 0], sizes = [64, 32], strides = [1, 1]} : vector<64x64xf32> to vector<64x32xf32>
    %54 = vector.extract_strided_slice %52 {offsets = [0, 32], sizes = [64, 32], strides = [1, 1]} : vector<64x64xf32> to vector<64x32xf32>
    %c0_22 = arith.constant 0 : index
    %c0_23 = arith.constant 0 : index
    %55 = vector.load %arg5[%c0_22, %c0_23] : memref<64x64xf32, #tpu.memory_space<vmem>>, vector<64x64xf32>
    %cst_24 = arith.constant dense<0.000000e+00> : vector<64x32xf32>
    %56 = tpu.matmul %55, %53, %cst_24 {dimension_numbers = #tpu.dot_dimension_numbers<[1], [0], [0], [1], [0, 0, 1, 1], [], []>} : vector<64x64xf32>, vector<64x32xf32>, vector<64x32xf32> -> vector<64x32xf32>
    %57 = arith.addf %56, %54 : vector<64x32xf32>
    %58 = vector.shape_cast %57 : vector<64x32xf32> to vector<8x8x32xf32>
    %c0_25 = arith.constant 0 : index
    %c0_26 = arith.constant 0 : index
    %c0_27 = arith.constant 0 : index
    %59 = vector.load %arg6[%c0_25, %c0_26, %c0_27] : memref<8x8x32xf32, #tpu.memory_space<vmem>>, vector<8x8x32xf32>
    tpu.vector_store %arg6[%c0_25, %c0_26, %c0_27], %58 {strides = array<i32>} : memref<8x8x32xf32, #tpu.memory_space<vmem>>, vector<8x8x32xf32>,
    return
  }
  func.func @transform_0(%arg0: i32) -> (i32, i32, i32) {
    %c0_i32 = arith.constant 0 : i32
    %c0_i32_0 = arith.constant 0 : i32
    %c0_i32_1 = arith.constant 0 : i32
    return %arg0, %c0_i32, %c0_i32_0 : i32, i32, i32
  }
  func.func @transform_1(%arg0: i32) -> (i32, i32) {
    %c0_i32 = arith.constant 0 : i32
    %c0_i32_0 = arith.constant 0 : i32
    %c0_i32_1 = arith.constant 0 : i32
    return %c0_i32, %c0_i32_0 : i32, i32
  }
  func.func @transform_2(%arg0: i32) -> (i32, i32) {
    %c0_i32 = arith.constant 0 : i32
    %c0_i32_0 = arith.constant 0 : i32
    %c0_i32_1 = arith.constant 0 : i32
    return %c0_i32, %c0_i32_0 : i32, i32
  }
  func.func @transform_3(%arg0: i32) -> (i32, i32) {
    %c0_i32 = arith.constant 0 : i32
    %c0_i32_0 = arith.constant 0 : i32
    %c0_i32_1 = arith.constant 0 : i32
    return %c0_i32, %c0_i32_0 : i32, i32
  }
  func.func @transform_4(%arg0: i32) -> (i32, i32) {
    %c0_i32 = arith.constant 0 : i32
    %c0_i32_0 = arith.constant 0 : i32
    %c0_i32_1 = arith.constant 0 : i32
    return %c0_i32, %c0_i32_0 : i32, i32
  }
  func.func @transform_5(%arg0: i32) -> (i32, i32, i32) {
    %c0_i32 = arith.constant 0 : i32
    %c0_i32_0 = arith.constant 0 : i32
    %c0_i32_1 = arith.constant 0 : i32
    return %arg0, %c0_i32, %c0_i32_0 : i32, i32, i32
  }
}

</mosaic_0001>

<llo_original>
// kernel: tpu_custom_call.1
$region0: #{tpu_custom_call.1}
  #allocation0 [shape = 'u32[]', space=smem, size = 0x4, offset = 0x4, fixed_abs, tag = 'smem constant byte address 0x4 - core index']
  #allocation1 [shape = 'u32[144,128]{1,0:T(1,128)}', space=vmem, size = 0x12000, scoped, tag = 'internal scratch']
  %s0 = inlined_call_operand.hbm [shape: f32[8,8,32], index: 0, kind: input, shape index: {}]
  %s1 = inlined_call_operand.hbm [shape: f32[32,64], index: 1, kind: input, shape index: {}]
  %s2 = inlined_call_operand.hbm [shape: f32[8,8], index: 2, kind: input, shape index: {}]
  %s3 = inlined_call_operand.hbm [shape: f32[64,64], index: 3, kind: input, shape index: {}]
  %s4 = inlined_call_operand.hbm [shape: f32[64,64], index: 4, kind: input, shape index: {}]
  %s5 = inlined_call_operand.hbm [shape: f32[8,8,32], index: 5, kind: output, shape index: {}]
  %s6 = sld [smem:[#allocation0]]
  $region50: #{tpu_custom_call.1} parent=0
    _
  %s8 = ssub.s32 1, %s6
  %s9 = scalar_select 0, %s8, %s6
  $region1: #{tpu_custom_call.1} parent=0
    #allocation2 [shape = 'u8[32768]{0}', space=vmem, size = 0x8000, scoped, tag = 'input window, operand 0, single buffered']
    #allocation3 [shape = 's32[1]{0}', space=sflag, size = 0x4, scoped, tag = 'scoped memory for tpu_custom_call.1']
    #allocation4 [shape = 's32[1]{0}', space=sflag, size = 0x4, scoped, tag = 'scoped memory for tpu_custom_call.1']
    #allocation5 [shape = 'u8[16384]{0}', space=vmem, size = 0x4000, scoped, tag = 'input window, operand 1, single buffered']
    #allocation6 [shape = 's32[1]{0}', space=sflag, size = 0x4, scoped, tag = 'scoped memory for tpu_custom_call.1']
    #allocation7 [shape = 'u8[4096]{0}', space=vmem, size = 0x1000, scoped, tag = 'input window, operand 2, single buffered']
    #allocation8 [shape = 'u8[32768]{0}', space=vmem, size = 0x8000, scoped, tag = 'input window, operand 3, single buffered']
    #allocation9 [shape = 's32[1]{0}', space=sflag, size = 0x4, scoped, tag = 'scoped memory for tpu_custom_call.1']
    #allocation10 [shape = 'u8[32768]{0}', space=vmem, size = 0x8000, scoped, tag = 'input window, operand 4, single buffered']
    #allocation11 [shape = 'u8[32768]{0}', space=vmem, size = 0x8000, scoped, tag = 'output window, operand 0, single buffered']
    %10 = vsyncpa [#allocation3], 0
    %11 = vsyncpa [#allocation6], 0
    %12 = vsyncpa [#allocation9], 0
    %13 = vsyncpa [#allocation4], 0
    // Predicated region
    $region2: #{tpu_custom_call.1} parent=1 // pred_check
      _
    $region3: #{tpu_custom_call.1} parent=1 // pred_check_branch
      %15 = sbr.rel (0) target = $region5
    $region4: #{tpu_custom_call.1} parent=1 // pred_region
      %s17 = ssub.s32 1024, 1024
      %18 = vsyncadd [#allocation3], %s17
      %s19 = sshll.u32 [#allocation2], 4
      %s20 = int_to_ptr.vmem [resolvable:$true] %s19
      %25 = dma.hbm_to_vmem [thread:$0]  %s0, 1024, %s20, [#allocation3], 128, 128, 8
    $region5: #{tpu_custom_call.1} parent=1 // pred_fallthru
      _
    // Predicated region
    $region6: #{tpu_custom_call.1} parent=1 // pred_check
      _
    $region7: #{tpu_custom_call.1} parent=1 // pred_check_branch
      %27 = sbr.rel (0) target = $region9
    $region8: #{tpu_custom_call.1} parent=1 // pred_region
      %s29 = ssub.s32 512, 512
      %30 = vsyncadd [#allocation6], %s29
      %s31 = sshll.u32 [#allocation5], 4
      %s32 = int_to_ptr.vmem [resolvable:$true] %s31
      %37 = dma.hbm_to_vmem [thread:$0]  %s1, 512, %s32, [#allocation6], 128, 128, 8
    $region9: #{tpu_custom_call.1} parent=1 // pred_fallthru
      _
    // Predicated region
    $region10: #{tpu_custom_call.1} parent=1 // pred_check
      _
    $region11: #{tpu_custom_call.1} parent=1 // pred_check_branch
      %39 = sbr.rel (0) target = $region13
    $region12: #{tpu_custom_call.1} parent=1 // pred_region
      %s41 = ssub.s32 128, 128
      %42 = vsyncadd [#allocation6], %s41
      %s44 = sshll.u32 [#allocation7], 4
      %s45 = int_to_ptr.vmem [resolvable:$true] %s44
      %47 = dma.hbm_to_vmem [thread:$0]  %s2, 128, %s45, [#allocation6]
    $region13: #{tpu_custom_call.1} parent=1 // pred_fallthru
      _
    // Predicated region
    $region14: #{tpu_custom_call.1} parent=1 // pred_check
      _
    $region15: #{tpu_custom_call.1} parent=1 // pred_check_branch
      %49 = sbr.rel (0) target = $region17
    $region16: #{tpu_custom_call.1} parent=1 // pred_region
      %s51 = ssub.s32 1024, 1024
      %52 = vsyncadd [#allocation9], %s51
      %s53 = sshll.u32 [#allocation8], 4
      %s54 = int_to_ptr.vmem [resolvable:$true] %s53
      %59 = dma.hbm_to_vmem [thread:$0]  %s3, 1024, %s54, [#allocation9], 128, 128, 8
    $region17: #{tpu_custom_call.1} parent=1 // pred_fallthru
      _
    // Predicated region
    $region18: #{tpu_custom_call.1} parent=1 // pred_check
      _
    $region19: #{tpu_custom_call.1} parent=1 // pred_check_branch
      %61 = sbr.rel (0) target = $region21
    $region20: #{tpu_custom_call.1} parent=1 // pred_region
      %s63 = ssub.s32 1024, 1024
      %64 = vsyncadd [#allocation9], %s63
      %s65 = sshll.u32 [#allocation10], 4
      %s66 = int_to_ptr.vmem [resolvable:$true] %s65
      %71 = dma.hbm_to_vmem [thread:$0]  %s4, 1024, %s66, [#allocation9], 128, 128, 8
    $region21: #{tpu_custom_call.1} parent=1 // pred_fallthru
      _
    // Predicated region
    $region22: #{tpu_custom_call.1} parent=1 // pred_check
      _
    $region23: #{tpu_custom_call.1} parent=1 // pred_check_branch
      %73 = sbr.rel (0) target = $region25
    $region24: #{tpu_custom_call.1} parent=1 // pred_region
      %74 = dma.done [#allocation3], 1024
    $region25: #{tpu_custom_call.1} parent=1 // pred_fallthru
      _
    // Predicated region
    $region26: #{tpu_custom_call.1} parent=1 // pred_check
      _
    $region27: #{tpu_custom_call.1} parent=1 // pred_check_branch
      %76 = sbr.rel (0) target = $region29
    $region28: #{tpu_custom_call.1} parent=1 // pred_region
      %77 = dma.done [#allocation6], 512
    $region29: #{tpu_custom_call.1} parent=1 // pred_fallthru
      _
    // Predicated region
    $region30: #{tpu_custom_call.1} parent=1 // pred_check
      _
    $region31: #{tpu_custom_call.1} parent=1 // pred_check_branch
      %79 = sbr.rel (0) target = $region33
    $region32: #{tpu_custom_call.1} parent=1 // pred_region
      %80 = dma.done [#allocation6], 128
    $region33: #{tpu_custom_call.1} parent=1 // pred_fallthru
      _
    // Predicated region
    $region34: #{tpu_custom_call.1} parent=1 // pred_check
      _
    $region35: #{tpu_custom_call.1} parent=1 // pred_check_branch
      %82 = sbr.rel (0) target = $region37
    $region36: #{tpu_custom_call.1} parent=1 // pred_region
      %83 = dma.done [#allocation9], 1024
    $region37: #{tpu_custom_call.1} parent=1 // pred_fallthru
      _
    // Predicated region
    $region38: #{tpu_custom_call.1} parent=1 // pred_check
      _
    $region39: #{tpu_custom_call.1} parent=1 // pred_check_branch
      %85 = sbr.rel (0) target = $region41
    $region40: #{tpu_custom_call.1} parent=1 // pred_region
      %86 = dma.done [#allocation9], 1024
    $region41: #{tpu_custom_call.1} parent=1 // pred_fallthru
      _
    %v87 = vld [vmem:[#allocation2] sm:$0xff]
    %v88 = vld [vmem:[#allocation2 + $0x8] sm:$0xff]
    %v89 = vld [vmem:[#allocation2 + $0x10] sm:$0xff]
    %v90 = vld [vmem:[#allocation2 + $0x18] sm:$0xff]
    %v91 = vld [vmem:[#allocation2 + $0x20] sm:$0xff]
    %v92 = vld [vmem:[#allocation2 + $0x28] sm:$0xff]
    %v93 = vld [vmem:[#allocation2 + $0x30] sm:$0xff]
    %v94 = vld [vmem:[#allocation2 + $0x38] sm:$0xff]
    %v95 = vld [vmem:[#allocation5] sm:$0xff]
    %v96 = vld [vmem:[#allocation5 + $0x8] sm:$0xff]
    %v97 = vld [vmem:[#allocation5 + $0x10] sm:$0xff]
    %v98 = vld [vmem:[#allocation5 + $0x18] sm:$0xff]
    %vm99 = vcmask 261120
    %v101 = vsel %vm99, %v87, 0
    %v104 = vsel %vm99, %v88, 0
    %v107 = vsel %vm99, %v89, 0
    %v110 = vsel %vm99, %v90, 0
    %v113 = vsel %vm99, %v91, 0
    %v116 = vsel %vm99, %v92, 0
    %v119 = vsel %vm99, %v93, 0
    %v122 = vsel %vm99, %v94, 0
    %124 = vmatprep.subr.mxu0 0.0
    %125 = vmatpush1.msra.mxu0 %v95
    %126 = vmatprep.subr.mxu0 0.0
    %127 = vmatpush1.msra.mxu0 %v96
    %128 = vmatprep.subr.mxu0 0.0
    %129 = vmatpush1.msra.mxu0 %v97
    %130 = vmatprep.subr.mxu0 0.0
    %131 = vmatpush1.msra.mxu0 %v98
    %132 = vmatprep.subr.mxu0 0.0
    %133 = vmatpush1.msra.mxu0 0.0
    %134 = vmatprep.subr.mxu0 0.0
    %135 = vmatpush1.msra.mxu0 0.0
    %136 = vmatprep.subr.mxu0 0.0
    %137 = vmatpush1.msra.mxu0 0.0
    %138 = vmatprep.subr.mxu0 0.0
    %139 = vmatpush1.msra.mxu0 0.0
    %140 = vmatprep.subr.mxu0 0.0
    %141 = vmatpush1.msra.mxu0 0.0
    %142 = vmatprep.subr.mxu0 0.0
    %143 = vmatpush1.msra.mxu0 0.0
    %144 = vmatprep.subr.mxu0 0.0
    %145 = vmatpush1.msra.mxu0 0.0
    %146 = vmatprep.subr.mxu0 0.0
    %147 = vmatpush1.msra.mxu0 0.0
    %148 = vmatprep.subr.mxu0 0.0
    %149 = vmatpush1.msra.mxu0 0.0
    %150 = vmatprep.subr.mxu0 0.0
    %151 = vmatpush1.msra.mxu0 0.0
    %152 = vmatprep.subr.mxu0 0.0
    %153 = vmatpush1.msra.mxu0 0.0
    %154 = vmatprep.subr.mxu0 0.0
    %155 = vmatpush1.msra.mxu0 0.0
    %156 = vmatprep.subr.mxu0 0.0
    %157 = vmatpush1.msra.mxu0 0.0
    %158 = vmatprep.subr.mxu0 0.0
    %159 = vmatpush1.msra.mxu0 0.0
    %160 = vmatprep.subr.mxu0 0.0
    %161 = vmatpush1.msra.mxu0 0.0
    %162 = vmatprep.subr.mxu0 0.0
    %163 = vmatpush1.msra.mxu0 0.0
    %164 = vmatprep.subr.mxu0 0.0
    %165 = vmatpush1.msra.mxu0 0.0
    %166 = vmatprep.subr.mxu0 0.0
    %167 = vmatpush1.msra.mxu0 0.0
    %168 = vmatprep.subr.mxu0 0.0
    %169 = vmatpush1.msra.mxu0 0.0
    %170 = vmatprep.subr.mxu0 0.0
    %171 = vmatpush1.msra.mxu0 0.0
    %172 = vmatprep.subr.mxu0 0.0
    %173 = vmatpush1.msra.mxu0 0.0
    %174 = vmatprep.subr.mxu0 0.0
    %175 = vmatpush1.msra.mxu0 0.0
    %176 = vmatprep.subr.mxu0 0.0
    %177 = vmatpush1.msra.mxu0 0.0
    %178 = vmatprep.subr.mxu0 0.0
    %179 = vmatpush1.msra.mxu0 0.0
    %180 = vmatprep.subr.mxu0 0.0
    %181 = vmatpush1.msra.mxu0 0.0
    %182 = vmatprep.subr.mxu0 0.0
    %183 = vmatpush1.msra.mxu0 0.0
    %184 = vmatprep.subr.mxu0 0.0
    %185 = vmatpush1.msra.mxu0 0.0
    %186 = vmatprep.subr.mxu0 0.0
    %187 = vmatpush1.msra.mxu0 0.0
    %188 = vmatprep.mubr.f32.mxu0 0.0
    %189 = vmatmul.mubr.f32.gmra.mrb[0].mxu0 %v101
    %v190 = vpop.f32.mrb[0].mxu0
    %v191 = vadd.f32 0.0, %v190
    %v192 = vpop.f32.mrb[0].mxu0
    %193 = vmatprep.mubr.f32.mxu0 0.0
    %194 = vmatmul.mubr.f32.gmra.mrb[0].mxu0 %v104
    %v195 = vpop.f32.mrb[0].mxu0
    %v196 = vadd.f32 0.0, %v195
    %v197 = vpop.f32.mrb[0].mxu0
    %198 = vmatprep.mubr.f32.mxu0 0.0
    %199 = vmatmul.mubr.f32.gmra.mrb[0].mxu0 %v107
    %v200 = vpop.f32.mrb[0].mxu0
    %v201 = vadd.f32 0.0, %v200
    %v202 = vpop.f32.mrb[0].mxu0
    %203 = vmatprep.mubr.f32.mxu0 0.0
    %204 = vmatmul.mubr.f32.gmra.mrb[0].mxu0 %v110
    %v205 = vpop.f32.mrb[0].mxu0
    %v206 = vadd.f32 0.0, %v205
    %v207 = vpop.f32.mrb[0].mxu0
    %208 = vmatprep.mubr.f32.mxu0 0.0
    %209 = vmatmul.mubr.f32.gmra.mrb[0].mxu0 %v113
    %v210 = vpop.f32.mrb[0].mxu0
    %v211 = vadd.f32 0.0, %v210
    %v212 = vpop.f32.mrb[0].mxu0
    %213 = vmatprep.mubr.f32.mxu0 0.0
    %214 = vmatmul.mubr.f32.gmra.mrb[0].mxu0 %v116
    %v215 = vpop.f32.mrb[0].mxu0
    %v216 = vadd.f32 0.0, %v215
    %v217 = vpop.f32.mrb[0].mxu0
    %218 = vmatprep.mubr.f32.mxu0 0.0
    %219 = vmatmul.mubr.f32.gmra.mrb[0].mxu0 %v119
    %v220 = vpop.f32.mrb[0].mxu0
    %v221 = vadd.f32 0.0, %v220
    %v222 = vpop.f32.mrb[0].mxu0
    %223 = vmatprep.mubr.f32.mxu0 0.0
    %224 = vmatmul.mubr.f32.gmra.mrb[0].mxu0 %v122
    %v225 = vpop.f32.mrb[0].mxu0
    %v226 = vadd.f32 0.0, %v225
    %v227 = vpop.f32.mrb[0].mxu0
    %228 = vdwg.mxu0
    %v230 = vsel %vm99, %v191, 0
    %232 = vmatprep.subr.mxu0 0.0
    %233 = vmatpush1.xpose.msra.mxu0 %v101
    %234 = vmatprep.subr.mxu0 0.0
    %235 = vmatpush1.xpose.msra.mxu0 0.0
    %236 = vmatprep.subr.mxu0 0.0
    %237 = vmatpush1.xpose.msra.mxu0 0.0
    %238 = vmatprep.subr.mxu0 0.0
    %239 = vmatpush1.xpose.msra.mxu0 0.0
    %240 = vmatprep.subr.mxu0 0.0
    %241 = vmatpush1.xpose.msra.mxu0 0.0
    %242 = vmatprep.subr.mxu0 0.0
    %243 = vmatpush1.xpose.msra.mxu0 0.0
    %244 = vmatprep.subr.mxu0 0.0
    %245 = vmatpush1.xpose.msra.mxu0 0.0
    %246 = vmatprep.subr.mxu0 0.0
    %247 = vmatpush1.xpose.msra.mxu0 0.0
    %248 = vmatprep.subr.mxu0 0.0
    %249 = vmatpush1.xpose.msra.mxu0 0.0
    %250 = vmatprep.subr.mxu0 0.0
    %251 = vmatpush1.xpose.msra.mxu0 0.0
    %252 = vmatprep.subr.mxu0 0.0
    %253 = vmatpush1.xpose.msra.mxu0 0.0
    %254 = vmatprep.subr.mxu0 0.0
    %255 = vmatpush1.xpose.msra.mxu0 0.0
    %256 = vmatprep.subr.mxu0 0.0
    %257 = vmatpush1.xpose.msra.mxu0 0.0
    %258 = vmatprep.subr.mxu0 0.0
    %259 = vmatpush1.xpose.msra.mxu0 0.0
    %260 = vmatprep.subr.mxu0 0.0
    %261 = vmatpush1.xpose.msra.mxu0 0.0
    %262 = vmatprep.subr.mxu0 0.0
    %263 = vmatpush1.xpose.msra.mxu0 0.0
    %264 = vmatprep.subr.mxu0 0.0
    %265 = vmatpush1.xpose.msra.mxu0 0.0
    %266 = vmatprep.subr.mxu0 0.0
    %267 = vmatpush1.xpose.msra.mxu0 0.0
    %268 = vmatprep.subr.mxu0 0.0
    %269 = vmatpush1.xpose.msra.mxu0 0.0
    %270 = vmatprep.subr.mxu0 0.0
    %271 = vmatpush1.xpose.msra.mxu0 0.0
    %272 = vmatprep.subr.mxu0 0.0
    %273 = vmatpush1.xpose.msra.mxu0 0.0
    %274 = vmatprep.subr.mxu0 0.0
    %275 = vmatpush1.xpose.msra.mxu0 0.0
    %276 = vmatprep.subr.mxu0 0.0
    %277 = vmatpush1.xpose.msra.mxu0 0.0
    %278 = vmatprep.subr.mxu0 0.0
    %279 = vmatpush1.xpose.msra.mxu0 0.0
    %280 = vmatprep.subr.mxu0 0.0
    %281 = vmatpush1.xpose.msra.mxu0 0.0
    %282 = vmatprep.subr.mxu0 0.0
    %283 = vmatpush1.xpose.msra.mxu0 0.0
    %284 = vmatprep.subr.mxu0 0.0
    %285 = vmatpush1.xpose.msra.mxu0 0.0
    %286 = vmatprep.subr.mxu0 0.0
    %287 = vmatpush1.xpose.msra.mxu0 0.0
    %288 = vmatprep.subr.mxu0 0.0
    %289 = vmatpush1.xpose.msra.mxu0 0.0
    %290 = vmatprep.subr.mxu0 0.0
    %291 = vmatpush1.xpose.msra.mxu0 0.0
    %292 = vmatprep.subr.mxu0 0.0
    %293 = vmatpush1.xpose.msra.mxu0 0.0
    %294 = vmatprep.subr.mxu0 0.0
    %295 = vmatpush1.xpose.msra.mxu0 0.0
    %296 = vmatprep.mubr.f32.mxu0 0.0
    %297 = vmatmul.mubr.f32.gmra.mrb[0].mxu0 %v230
    %v298 = vpop.f32.mrb[0].mxu0
    %v299 = vadd.f32 0.0, %v298
    %v300 = vpop.f32.mrb[0].mxu0
    %301 = vdwg.mxu0
    %v303 = vsel %vm99, %v196, 0
    %305 = vmatprep.subr.mxu0 0.0
    %306 = vmatpush1.xpose.msra.mxu0 %v104
    %307 = vmatprep.subr.mxu0 0.0
    %308 = vmatpush1.xpose.msra.mxu0 0.0
    %309 = vmatprep.subr.mxu0 0.0
    %310 = vmatpush1.xpose.msra.mxu0 0.0
    %311 = vmatprep.subr.mxu0 0.0
    %312 = vmatpush1.xpose.msra.mxu0 0.0
    %313 = vmatprep.subr.mxu0 0.0
    %314 = vmatpush1.xpose.msra.mxu0 0.0
    %315 = vmatprep.subr.mxu0 0.0
    %316 = vmatpush1.xpose.msra.mxu0 0.0
    %317 = vmatprep.subr.mxu0 0.0
    %318 = vmatpush1.xpose.msra.mxu0 0.0
    %319 = vmatprep.subr.mxu0 0.0
    %320 = vmatpush1.xpose.msra.mxu0 0.0
    %321 = vmatprep.subr.mxu0 0.0
    %322 = vmatpush1.xpose.msra.mxu0 0.0
    %323 = vmatprep.subr.mxu0 0.0
    %324 = vmatpush1.xpose.msra.mxu0 0.0
    %325 = vmatprep.subr.mxu0 0.0
    %326 = vmatpush1.xpose.msra.mxu0 0.0
    %327 = vmatprep.subr.mxu0 0.0
    %328 = vmatpush1.xpose.msra.mxu0 0.0
    %329 = vmatprep.subr.mxu0 0.0
    %330 = vmatpush1.xpose.msra.mxu0 0.0
    %331 = vmatprep.subr.mxu0 0.0
    %332 = vmatpush1.xpose.msra.mxu0 0.0
    %333 = vmatprep.subr.mxu0 0.0
    %334 = vmatpush1.xpose.msra.mxu0 0.0
    %335 = vmatprep.subr.mxu0 0.0
    %336 = vmatpush1.xpose.msra.mxu0 0.0
    %337 = vmatprep.subr.mxu0 0.0
    %338 = vmatpush1.xpose.msra.mxu0 0.0
    %339 = vmatprep.subr.mxu0 0.0
    %340 = vmatpush1.xpose.msra.mxu0 0.0
    %341 = vmatprep.subr.mxu0 0.0
    %342 = vmatpush1.xpose.msra.mxu0 0.0
    %343 = vmatprep.subr.mxu0 0.0
    %344 = vmatpush1.xpose.msra.mxu0 0.0
    %345 = vmatprep.subr.mxu0 0.0
    %346 = vmatpush1.xpose.msra.mxu0 0.0
    %347 = vmatprep.subr.mxu0 0.0
    %348 = vmatpush1.xpose.msra.mxu0 0.0
    %349 = vmatprep.subr.mxu0 0.0
    %350 = vmatpush1.xpose.msra.mxu0 0.0
    %351 = vmatprep.subr.mxu0 0.0
    %352 = vmatpush1.xpose.msra.mxu0 0.0
    %353 = vmatprep.subr.mxu0 0.0
    %354 = vmatpush1.xpose.msra.mxu0 0.0
    %355 = vmatprep.subr.mxu0 0.0
    %356 = vmatpush1.xpose.msra.mxu0 0.0
    %357 = vmatprep.subr.mxu0 0.0
    %358 = vmatpush1.xpose.msra.mxu0 0.0
    %359 = vmatprep.subr.mxu0 0.0
    %360 = vmatpush1.xpose.msra.mxu0 0.0
    %361 = vmatprep.subr.mxu0 0.0
    %362 = vmatpush1.xpose.msra.mxu0 0.0
    %363 = vmatprep.subr.mxu0 0.0
    %364 = vmatpush1.xpose.msra.mxu0 0.0
    %365 = vmatprep.subr.mxu0 0.0
    %366 = vmatpush1.xpose.msra.mxu0 0.0
    %367 = vmatprep.subr.mxu0 0.0
    %368 = vmatpush1.xpose.msra.mxu0 0.0
    %369 = vmatprep.mubr.f32.mxu0 0.0
    %370 = vmatmul.mubr.f32.gmra.mrb[0].mxu0 %v303
    %v371 = vpop.f32.mrb[0].mxu0
    %v372 = vadd.f32 0.0, %v371
    %v373 = vpop.f32.mrb[0].mxu0
    %374 = vdwg.mxu0
    %v376 = vsel %vm99, %v201, 0
    %378 = vmatprep.subr.mxu0 0.0
    %379 = vmatpush1.xpose.msra.mxu0 %v107
    %380 = vmatprep.subr.mxu0 0.0
    %381 = vmatpush1.xpose.msra.mxu0 0.0
    %382 = vmatprep.subr.mxu0 0.0
    %383 = vmatpush1.xpose.msra.mxu0 0.0
    %384 = vmatprep.subr.mxu0 0.0
    %385 = vmatpush1.xpose.msra.mxu0 0.0
    %386 = vmatprep.subr.mxu0 0.0
    %387 = vmatpush1.xpose.msra.mxu0 0.0
    %388 = vmatprep.subr.mxu0 0.0
    %389 = vmatpush1.xpose.msra.mxu0 0.0
    %390 = vmatprep.subr.mxu0 0.0
    %391 = vmatpush1.xpose.msra.mxu0 0.0
    %392 = vmatprep.subr.mxu0 0.0
    %393 = vmatpush1.xpose.msra.mxu0 0.0
    %394 = vmatprep.subr.mxu0 0.0
    %395 = vmatpush1.xpose.msra.mxu0 0.0
    %396 = vmatprep.subr.mxu0 0.0
    %397 = vmatpush1.xpose.msra.mxu0 0.0
    %398 = vmatprep.subr.mxu0 0.0
    %399 = vmatpush1.xpose.msra.mxu0 0.0
    %400 = vmatprep.subr.mxu0 0.0
    %401 = vmatpush1.xpose.msra.mxu0 0.0
    %402 = vmatprep.subr.mxu0 0.0
    %403 = vmatpush1.xpose.msra.mxu0 0.0
    %404 = vmatprep.subr.mxu0 0.0
    %405 = vmatpush1.xpose.msra.mxu0 0.0
    %406 = vmatprep.subr.mxu0 0.0
    %407 = vmatpush1.xpose.msra.mxu0 0.0
    %408 = vmatprep.subr.mxu0 0.0
    %409 = vmatpush1.xpose.msra.mxu0 0.0
    %410 = vmatprep.subr.mxu0 0.0
    %411 = vmatpush1.xpose.msra.mxu0 0.0
    %412 = vmatprep.subr.mxu0 0.0
    %413 = vmatpush1.xpose.msra.mxu0 0.0
    %414 = vmatprep.subr.mxu0 0.0
    %415 = vmatpush1.xpose.msra.mxu0 0.0
    %416 = vmatprep.subr.mxu0 0.0
    %417 = vmatpush1.xpose.msra.mxu0 0.0
    %418 = vmatprep.subr.mxu0 0.0
    %419 = vmatpush1.xpose.msra.mxu0 0.0
    %420 = vmatprep.subr.mxu0 0.0
    %421 = vmatpush1.xpose.msra.mxu0 0.0
    %422 = vmatprep.subr.mxu0 0.0
    %423 = vmatpush1.xpose.msra.mxu0 0.0
    %424 = vmatprep.subr.mxu0 0.0
    %425 = vmatpush1.xpose.msra.mxu0 0.0
    %426 = vmatprep.subr.mxu0 0.0
    %427 = vmatpush1.xpose.msra.mxu0 0.0
    %428 = vmatprep.subr.mxu0 0.0
    %429 = vmatpush1.xpose.msra.mxu0 0.0
    %430 = vmatprep.subr.mxu0 0.0
    %431 = vmatpush1.xpose.msra.mxu0 0.0
    %432 = vmatprep.subr.mxu0 0.0
    %433 = vmatpush1.xpose.msra.mxu0 0.0
    %434 = vmatprep.subr.mxu0 0.0
    %435 = vmatpush1.xpose.msra.mxu0 0.0
    %436 = vmatprep.subr.mxu0 0.0
    %437 = vmatpush1.xpose.msra.mxu0 0.0
    %438 = vmatprep.subr.mxu0 0.0
    %439 = vmatpush1.xpose.msra.mxu0 0.0
    %440 = vmatprep.subr.mxu0 0.0
    %441 = vmatpush1.xpose.msra.mxu0 0.0
    %442 = vmatprep.mubr.f32.mxu0 0.0
    %443 = vmatmul.mubr.f32.gmra.mrb[0].mxu0 %v376
    %v444 = vpop.f32.mrb[0].mxu0
    %v445 = vadd.f32 0.0, %v444
    %v446 = vpop.f32.mrb[0].mxu0
    %447 = vdwg.mxu0
    %v449 = vsel %vm99, %v206, 0
    %451 = vmatprep.subr.mxu0 0.0
    %452 = vmatpush1.xpose.msra.mxu0 %v110
    %453 = vmatprep.subr.mxu0 0.0
    %454 = vmatpush1.xpose.msra.mxu0 0.0
    %455 = vmatprep.subr.mxu0 0.0
    %456 = vmatpush1.xpose.msra.mxu0 0.0
    %457 = vmatprep.subr.mxu0 0.0
    %458 = vmatpush1.xpose.msra.mxu0 0.0
    %459 = vmatprep.subr.mxu0 0.0
    %460 = vmatpush1.xpose.msra.mxu0 0.0
    %461 = vmatprep.subr.mxu0 0.0
    %462 = vmatpush1.xpose.msra.mxu0 0.0
    %463 = vmatprep.subr.mxu0 0.0
    %464 = vmatpush1.xpose.msra.mxu0 0.0
    %465 = vmatprep.subr.mxu0 0.0
    %466 = vmatpush1.xpose.msra.mxu0 0.0
    %467 = vmatprep.subr.mxu0 0.0
    %468 = vmatpush1.xpose.msra.mxu0 0.0
    %469 = vmatprep.subr.mxu0 0.0
    %470 = vmatpush1.xpose.msra.mxu0 0.0
    %471 = vmatprep.subr.mxu0 0.0
    %472 = vmatpush1.xpose.msra.mxu0 0.0
    %473 = vmatprep.subr.mxu0 0.0
    %474 = vmatpush1.xpose.msra.mxu0 0.0
    %475 = vmatprep.subr.mxu0 0.0
    %476 = vmatpush1.xpose.msra.mxu0 0.0
    %477 = vmatprep.subr.mxu0 0.0
    %478 = vmatpush1.xpose.msra.mxu0 0.0
    %479 = vmatprep.subr.mxu0 0.0
    %480 = vmatpush1.xpose.msra.mxu0 0.0
    %481 = vmatprep.subr.mxu0 0.0
    %482 = vmatpush1.xpose.msra.mxu0 0.0
    %483 = vmatprep.subr.mxu0 0.0
    %484 = vmatpush1.xpose.msra.mxu0 0.0
    %485 = vmatprep.subr.mxu0 0.0
    %486 = vmatpush1.xpose.msra.mxu0 0.0
    %487 = vmatprep.subr.mxu0 0.0
    %488 = vmatpush1.xpose.msra.mxu0 0.0
    %489 = vmatprep.subr.mxu0 0.0
    %490 = vmatpush1.xpose.msra.mxu0 0.0
    %491 = vmatprep.subr.mxu0 0.0
    %492 = vmatpush1.xpose.msra.mxu0 0.0
    %493 = vmatprep.subr.mxu0 0.0
    %494 = vmatpush1.xpose.msra.mxu0 0.0
    %495 = vmatprep.subr.mxu0 0.0
    %496 = vmatpush1.xpose.msra.mxu0 0.0
    %497 = vmatprep.subr.mxu0 0.0
    %498 = vmatpush1.xpose.msra.mxu0 0.0
    %499 = vmatprep.subr.mxu0 0.0
    %500 = vmatpush1.xpose.msra.mxu0 0.0
    %501 = vmatprep.subr.mxu0 0.0
    %502 = vmatpush1.xpose.msra.mxu0 0.0
    %503 = vmatprep.subr.mxu0 0.0
    %504 = vmatpush1.xpose.msra.mxu0 0.0
    %505 = vmatprep.subr.mxu0 0.0
    %506 = vmatpush1.xpose.msra.mxu0 0.0
    %507 = vmatprep.subr.mxu0 0.0
    %508 = vmatpush1.xpose.msra.mxu0 0.0
    %509 = vmatprep.subr.mxu0 0.0
    %510 = vmatpush1.xpose.msra.mxu0 0.0
    %511 = vmatprep.subr.mxu0 0.0
    %512 = vmatpush1.xpose.msra.mxu0 0.0
    %513 = vmatprep.subr.mxu0 0.0
    %514 = vmatpush1.xpose.msra.mxu0 0.0
    %515 = vmatprep.mubr.f32.mxu0 0.0
    %516 = vmatmul.mubr.f32.gmra.mrb[0].mxu0 %v449
    %v517 = vpop.f32.mrb[0].mxu0
    %v518 = vadd.f32 0.0, %v517
    %v519 = vpop.f32.mrb[0].mxu0
    %520 = vdwg.mxu0
    %v522 = vsel %vm99, %v211, 0
    %524 = vmatprep.subr.mxu0 0.0
    %525 = vmatpush1.xpose.msra.mxu0 %v113
    %526 = vmatprep.subr.mxu0 0.0
    %527 = vmatpush1.xpose.msra.mxu0 0.0
    %528 = vmatprep.subr.mxu0 0.0
    %529 = vmatpush1.xpose.msra.mxu0 0.0
    %530 = vmatprep.subr.mxu0 0.0
    %531 = vmatpush1.xpose.msra.mxu0 0.0
    %532 = vmatprep.subr.mxu0 0.0
    %533 = vmatpush1.xpose.msra.mxu0 0.0
    %534 = vmatprep.subr.mxu0 0.0
    %535 = vmatpush1.xpose.msra.mxu0 0.0
    %536 = vmatprep.subr.mxu0 0.0
    %537 = vmatpush1.xpose.msra.mxu0 0.0
    %538 = vmatprep.subr.mxu0 0.0
    %539 = vmatpush1.xpose.msra.mxu0 0.0
    %540 = vmatprep.subr.mxu0 0.0
    %541 = vmatpush1.xpose.msra.mxu0 0.0
    %542 = vmatprep.subr.mxu0 0.0
    %543 = vmatpush1.xpose.msra.mxu0 0.0
    %544 = vmatprep.subr.mxu0 0.0
    %545 = vmatpush1.xpose.msra.mxu0 0.0
    %546 = vmatprep.subr.mxu0 0.0
    %547 = vmatpush1.xpose.msra.mxu0 0.0
    %548 = vmatprep.subr.mxu0 0.0
    %549 = vmatpush1.xpose.msra.mxu0 0.0
    %550 = vmatprep.subr.mxu0 0.0
    %551 = vmatpush1.xpose.msra.mxu0 0.0
    %552 = vmatprep.subr.mxu0 0.0
    %553 = vmatpush1.xpose.msra.mxu0 0.0
    %554 = vmatprep.subr.mxu0 0.0
    %555 = vmatpush1.xpose.msra.mxu0 0.0
    %556 = vmatprep.subr.mxu0 0.0
    %557 = vmatpush1.xpose.msra.mxu0 0.0
    %558 = vmatprep.subr.mxu0 0.0
    %559 = vmatpush1.xpose.msra.mxu0 0.0
    %560 = vmatprep.subr.mxu0 0.0
    %561 = vmatpush1.xpose.msra.mxu0 0.0
    %562 = vmatprep.subr.mxu0 0.0
    %563 = vmatpush1.xpose.msra.mxu0 0.0
    %564 = vmatprep.subr.mxu0 0.0
    %565 = vmatpush1.xpose.msra.mxu0 0.0
    %566 = vmatprep.subr.mxu0 0.0
    %567 = vmatpush1.xpose.msra.mxu0 0.0
    %568 = vmatprep.subr.mxu0 0.0
    %569 = vmatpush1.xpose.msra.mxu0 0.0
    %570 = vmatprep.subr.mxu0 0.0
    %571 = vmatpush1.xpose.msra.mxu0 0.0
    %572 = vmatprep.subr.mxu0 0.0
    %573 = vmatpush1.xpose.msra.mxu0 0.0
    %574 = vmatprep.subr.mxu0 0.0
    %575 = vmatpush1.xpose.msra.mxu0 0.0
    %576 = vmatprep.subr.mxu0 0.0
    %577 = vmatpush1.xpose.msra.mxu0 0.0
    %578 = vmatprep.subr.mxu0 0.0
    %579 = vmatpush1.xpose.msra.mxu0 0.0
    %580 = vmatprep.subr.mxu0 0.0
    %581 = vmatpush1.xpose.msra.mxu0 0.0
    %582 = vmatprep.subr.mxu0 0.0
    %583 = vmatpush1.xpose.msra.mxu0 0.0
    %584 = vmatprep.subr.mxu0 0.0
    %585 = vmatpush1.xpose.msra.mxu0 0.0
    %586 = vmatprep.subr.mxu0 0.0
    %587 = vmatpush1.xpose.msra.mxu0 0.0
    %588 = vmatprep.mubr.f32.mxu0 0.0
    %589 = vmatmul.mubr.f32.gmra.mrb[0].mxu0 %v522
    %v590 = vpop.f32.mrb[0].mxu0
    %v591 = vadd.f32 0.0, %v590
    %v592 = vpop.f32.mrb[0].mxu0
    %593 = vdwg.mxu0
    %v595 = vsel %vm99, %v216, 0
    %597 = vmatprep.subr.mxu0 0.0
    %598 = vmatpush1.xpose.msra.mxu0 %v116
    %599 = vmatprep.subr.mxu0 0.0
    %600 = vmatpush1.xpose.msra.mxu0 0.0
    %601 = vmatprep.subr.mxu0 0.0
    %602 = vmatpush1.xpose.msra.mxu0 0.0
    %603 = vmatprep.subr.mxu0 0.0
    %604 = vmatpush1.xpose.msra.mxu0 0.0
    %605 = vmatprep.subr.mxu0 0.0
    %606 = vmatpush1.xpose.msra.mxu0 0.0
    %607 = vmatprep.subr.mxu0 0.0
    %608 = vmatpush1.xpose.msra.mxu0 0.0
    %609 = vmatprep.subr.mxu0 0.0
    %610 = vmatpush1.xpose.msra.mxu0 0.0
    %611 = vmatprep.subr.mxu0 0.0
    %612 = vmatpush1.xpose.msra.mxu0 0.0
    %613 = vmatprep.subr.mxu0 0.0
    %614 = vmatpush1.xpose.msra.mxu0 0.0
    %615 = vmatprep.subr.mxu0 0.0
    %616 = vmatpush1.xpose.msra.mxu0 0.0
    %617 = vmatprep.subr.mxu0 0.0
    %618 = vmatpush1.xpose.msra.mxu0 0.0
    %619 = vmatprep.subr.mxu0 0.0
    %620 = vmatpush1.xpose.msra.mxu0 0.0
    %621 = vmatprep.subr.mxu0 0.0
    %622 = vmatpush1.xpose.msra.mxu0 0.0
    %623 = vmatprep.subr.mxu0 0.0
    %624 = vmatpush1.xpose.msra.mxu0 0.0
    %625 = vmatprep.subr.mxu0 0.0
    %626 = vmatpush1.xpose.msra.mxu0 0.0
    %627 = vmatprep.subr.mxu0 0.0
    %628 = vmatpush1.xpose.msra.mxu0 0.0
    %629 = vmatprep.subr.mxu0 0.0
    %630 = vmatpush1.xpose.msra.mxu0 0.0
    %631 = vmatprep.subr.mxu0 0.0
    %632 = vmatpush1.xpose.msra.mxu0 0.0
    %633 = vmatprep.subr.mxu0 0.0
    %634 = vmatpush1.xpose.msra.mxu0 0.0
    %635 = vmatprep.subr.mxu0 0.0
    %636 = vmatpush1.xpose.msra.mxu0 0.0
    %637 = vmatprep.subr.mxu0 0.0
    %638 = vmatpush1.xpose.msra.mxu0 0.0
    %639 = vmatprep.subr.mxu0 0.0
    %640 = vmatpush1.xpose.msra.mxu0 0.0
    %641 = vmatprep.subr.mxu0 0.0
    %642 = vmatpush1.xpose.msra.mxu0 0.0
    %643 = vmatprep.subr.mxu0 0.0
    %644 = vmatpush1.xpose.msra.mxu0 0.0
    %645 = vmatprep.subr.mxu0 0.0
    %646 = vmatpush1.xpose.msra.mxu0 0.0
    %647 = vmatprep.subr.mxu0 0.0
    %648 = vmatpush1.xpose.msra.mxu0 0.0
    %649 = vmatprep.subr.mxu0 0.0
    %650 = vmatpush1.xpose.msra.mxu0 0.0
    %651 = vmatprep.subr.mxu0 0.0
    %652 = vmatpush1.xpose.msra.mxu0 0.0
    %653 = vmatprep.subr.mxu0 0.0
    %654 = vmatpush1.xpose.msra.mxu0 0.0
    %655 = vmatprep.subr.mxu0 0.0
    %656 = vmatpush1.xpose.msra.mxu0 0.0
    %657 = vmatprep.subr.mxu0 0.0
    %658 = vmatpush1.xpose.msra.mxu0 0.0
    %659 = vmatprep.subr.mxu0 0.0
    %660 = vmatpush1.xpose.msra.mxu0 0.0
    %661 = vmatprep.mubr.f32.mxu0 0.0
    %662 = vmatmul.mubr.f32.gmra.mrb[0].mxu0 %v595
    %v663 = vpop.f32.mrb[0].mxu0
    %v664 = vadd.f32 0.0, %v663
    %v665 = vpop.f32.mrb[0].mxu0
    %666 = vdwg.mxu0
    %v668 = vsel %vm99, %v221, 0
    %670 = vmatprep.subr.mxu0 0.0
    %671 = vmatpush1.xpose.msra.mxu0 %v119
    %672 = vmatprep.subr.mxu0 0.0
    %673 = vmatpush1.xpose.msra.mxu0 0.0
    %674 = vmatprep.subr.mxu0 0.0
    %675 = vmatpush1.xpose.msra.mxu0 0.0
    %676 = vmatprep.subr.mxu0 0.0
    %677 = vmatpush1.xpose.msra.mxu0 0.0
    %678 = vmatprep.subr.mxu0 0.0
    %679 = vmatpush1.xpose.msra.mxu0 0.0
    %680 = vmatprep.subr.mxu0 0.0
    %681 = vmatpush1.xpose.msra.mxu0 0.0
    %682 = vmatprep.subr.mxu0 0.0
    %683 = vmatpush1.xpose.msra.mxu0 0.0
    %684 = vmatprep.subr.mxu0 0.0
    %685 = vmatpush1.xpose.msra.mxu0 0.0
    %686 = vmatprep.subr.mxu0 0.0
    %687 = vmatpush1.xpose.msra.mxu0 0.0
    %688 = vmatprep.subr.mxu0 0.0
    %689 = vmatpush1.xpose.msra.mxu0 0.0
    %690 = vmatprep.subr.mxu0 0.0
    %691 = vmatpush1.xpose.msra.mxu0 0.0
    %692 = vmatprep.subr.mxu0 0.0
    %693 = vmatpush1.xpose.msra.mxu0 0.0
    %694 = vmatprep.subr.mxu0 0.0
    %695 = vmatpush1.xpose.msra.mxu0 0.0
    %696 = vmatprep.subr.mxu0 0.0
    %697 = vmatpush1.xpose.msra.mxu0 0.0
    %698 = vmatprep.subr.mxu0 0.0
    %699 = vmatpush1.xpose.msra.mxu0 0.0
    %700 = vmatprep.subr.mxu0 0.0
    %701 = vmatpush1.xpose.msra.mxu0 0.0
    %702 = vmatprep.subr.mxu0 0.0
    %703 = vmatpush1.xpose.msra.mxu0 0.0
    %704 = vmatprep.subr.mxu0 0.0
    %705 = vmatpush1.xpose.msra.mxu0 0.0
    %706 = vmatprep.subr.mxu0 0.0
    %707 = vmatpush1.xpose.msra.mxu0 0.0
    %708 = vmatprep.subr.mxu0 0.0
    %709 = vmatpush1.xpose.msra.mxu0 0.0
    %710 = vmatprep.subr.mxu0 0.0
    %711 = vmatpush1.xpose.msra.mxu0 0.0
    %712 = vmatprep.subr.mxu0 0.0
    %713 = vmatpush1.xpose.msra.mxu0 0.0
    %714 = vmatprep.subr.mxu0 0.0
    %715 = vmatpush1.xpose.msra.mxu0 0.0
    %716 = vmatprep.subr.mxu0 0.0
    %717 = vmatpush1.xpose.msra.mxu0 0.0
    %718 = vmatprep.subr.mxu0 0.0
    %719 = vmatpush1.xpose.msra.mxu0 0.0
    %720 = vmatprep.subr.mxu0 0.0
    %721 = vmatpush1.xpose.msra.mxu0 0.0
    %722 = vmatprep.subr.mxu0 0.0
    %723 = vmatpush1.xpose.msra.mxu0 0.0
    %724 = vmatprep.subr.mxu0 0.0
    %725 = vmatpush1.xpose.msra.mxu0 0.0
    %726 = vmatprep.subr.mxu0 0.0
    %727 = vmatpush1.xpose.msra.mxu0 0.0
    %728 = vmatprep.subr.mxu0 0.0
    %729 = vmatpush1.xpose.msra.mxu0 0.0
    %730 = vmatprep.subr.mxu0 0.0
    %731 = vmatpush1.xpose.msra.mxu0 0.0
    %732 = vmatprep.subr.mxu0 0.0
    %733 = vmatpush1.xpose.msra.mxu0 0.0
    %734 = vmatprep.mubr.f32.mxu0 0.0
    %735 = vmatmul.mubr.f32.gmra.mrb[0].mxu0 %v668
    %v736 = vpop.f32.mrb[0].mxu0
    %v737 = vadd.f32 0.0, %v736
    %v738 = vpop.f32.mrb[0].mxu0
    %739 = vdwg.mxu0
    %v741 = vsel %vm99, %v226, 0
    %743 = vmatprep.subr.mxu0 0.0
    %744 = vmatpush1.xpose.msra.mxu0 %v122
    %745 = vmatprep.subr.mxu0 0.0
    %746 = vmatpush1.xpose.msra.mxu0 0.0
    %747 = vmatprep.subr.mxu0 0.0
    %748 = vmatpush1.xpose.msra.mxu0 0.0
    %749 = vmatprep.subr.mxu0 0.0
    %750 = vmatpush1.xpose.msra.mxu0 0.0
    %751 = vmatprep.subr.mxu0 0.0
    %752 = vmatpush1.xpose.msra.mxu0 0.0
    %753 = vmatprep.subr.mxu0 0.0
    %754 = vmatpush1.xpose.msra.mxu0 0.0
    %755 = vmatprep.subr.mxu0 0.0
    %756 = vmatpush1.xpose.msra.mxu0 0.0
    %757 = vmatprep.subr.mxu0 0.0
    %758 = vmatpush1.xpose.msra.mxu0 0.0
    %759 = vmatprep.subr.mxu0 0.0
    %760 = vmatpush1.xpose.msra.mxu0 0.0
    %761 = vmatprep.subr.mxu0 0.0
    %762 = vmatpush1.xpose.msra.mxu0 0.0
    %763 = vmatprep.subr.mxu0 0.0
    %764 = vmatpush1.xpose.msra.mxu0 0.0
    %765 = vmatprep.subr.mxu0 0.0
    %766 = vmatpush1.xpose.msra.mxu0 0.0
    %767 = vmatprep.subr.mxu0 0.0
    %768 = vmatpush1.xpose.msra.mxu0 0.0
    %769 = vmatprep.subr.mxu0 0.0
    %770 = vmatpush1.xpose.msra.mxu0 0.0
    %771 = vmatprep.subr.mxu0 0.0
    %772 = vmatpush1.xpose.msra.mxu0 0.0
    %773 = vmatprep.subr.mxu0 0.0
    %774 = vmatpush1.xpose.msra.mxu0 0.0
    %775 = vmatprep.subr.mxu0 0.0
    %776 = vmatpush1.xpose.msra.mxu0 0.0
    %777 = vmatprep.subr.mxu0 0.0
    %778 = vmatpush1.xpose.msra.mxu0 0.0
    %779 = vmatprep.subr.mxu0 0.0
    %780 = vmatpush1.xpose.msra.mxu0 0.0
    %781 = vmatprep.subr.mxu0 0.0
    %782 = vmatpush1.xpose.msra.mxu0 0.0
    %783 = vmatprep.subr.mxu0 0.0
    %784 = vmatpush1.xpose.msra.mxu0 0.0
    %785 = vmatprep.subr.mxu0 0.0
    %786 = vmatpush1.xpose.msra.mxu0 0.0
    %787 = vmatprep.subr.mxu0 0.0
    %788 = vmatpush1.xpose.msra.mxu0 0.0
    %789 = vmatprep.subr.mxu0 0.0
    %790 = vmatpush1.xpose.msra.mxu0 0.0
    %791 = vmatprep.subr.mxu0 0.0
    %792 = vmatpush1.xpose.msra.mxu0 0.0
    %793 = vmatprep.subr.mxu0 0.0
    %794 = vmatpush1.xpose.msra.mxu0 0.0
    %795 = vmatprep.subr.mxu0 0.0
    %796 = vmatpush1.xpose.msra.mxu0 0.0
    %797 = vmatprep.subr.mxu0 0.0
    %798 = vmatpush1.xpose.msra.mxu0 0.0
    %799 = vmatprep.subr.mxu0 0.0
    %800 = vmatpush1.xpose.msra.mxu0 0.0
    %801 = vmatprep.subr.mxu0 0.0
    %802 = vmatpush1.xpose.msra.mxu0 0.0
    %803 = vmatprep.subr.mxu0 0.0
    %804 = vmatpush1.xpose.msra.mxu0 0.0
    %805 = vmatprep.subr.mxu0 0.0
    %806 = vmatpush1.xpose.msra.mxu0 0.0
    %807 = vmatprep.mubr.f32.mxu0 0.0
    %808 = vmatmul.mubr.f32.gmra.mrb[0].mxu0 %v741
    %v809 = vpop.f32.mrb[0].mxu0
    %v810 = vadd.f32 0.0, %v809
    %v811 = vpop.f32.mrb[0].mxu0
    %812 = vdwg.mxu0
    %vm813 = vcmask 64512
    %v814 = vsel %vm813, %v299, -inf
    %815 = vmax.xlane.f32.xlu0 %v814
    %v816 = vpop.xlane.xlu0 %815
    %v817 = vsel %vm813, %v372, -inf
    %818 = vmax.xlane.f32.xlu0 %v817
    %v819 = vpop.xlane.xlu0 %818
    %v820 = vsel %vm813, %v445, -inf
    %821 = vmax.xlane.f32.xlu0 %v820
    %v822 = vpop.xlane.xlu0 %821
    %v823 = vsel %vm813, %v518, -inf
    %824 = vmax.xlane.f32.xlu0 %v823
    %v825 = vpop.xlane.xlu0 %824
    %v826 = vsel %vm813, %v591, -inf
    %827 = vmax.xlane.f32.xlu0 %v826
    %v828 = vpop.xlane.xlu0 %827
    %v829 = vsel %vm813, %v664, -inf
    %830 = vmax.xlane.f32.xlu0 %v829
    %v831 = vpop.xlane.xlu0 %830
    %v832 = vsel %vm813, %v737, -inf
    %833 = vmax.xlane.f32.xlu0 %v832
    %v834 = vpop.xlane.xlu0 %833
    %v835 = vsel %vm813, %v810, -inf
    %836 = vmax.xlane.f32.xlu0 %v835
    %v837 = vpop.xlane.xlu0 %836
    %v838 = vsub.f32 %v299, %v816
    %v839 = vsub.f32 %v372, %v819
    %v840 = vsub.f32 %v445, %v822
    %v841 = vsub.f32 %v518, %v825
    %v842 = vsub.f32 %v591, %v828
    %v843 = vsub.f32 %v664, %v831
    %v844 = vsub.f32 %v737, %v834
    %v845 = vsub.f32 %v810, %v837
    %v846 = vmul.f32 %v838, 1.442695
    %v847 = vpow.pop %v846
    %v848 = vmul.f32 %v839, 1.442695
    %v849 = vpow.pop %v848
    %v850 = vmul.f32 %v840, 1.442695
    %v851 = vpow.pop %v850
    %v852 = vmul.f32 %v841, 1.442695
    %v853 = vpow.pop %v852
    %v854 = vmul.f32 %v842, 1.442695
    %v855 = vpow.pop %v854
    %v856 = vmul.f32 %v843, 1.442695
    %v857 = vpow.pop %v856
    %v858 = vmul.f32 %v844, 1.442695
    %v859 = vpow.pop %v858
    %v860 = vmul.f32 %v845, 1.442695
    %v861 = vpow.pop %v860
    %v862 = vsel %vm813, %v847, 0.0
    %863 = vadd.xlane.f32.xlu0 %v862
    %v864 = vpop.xlane.xlu0 %863
    %v865 = vsel %vm813, %v849, 0.0
    %866 = vadd.xlane.f32.xlu0 %v865
    %v867 = vpop.xlane.xlu0 %866
    %v868 = vsel %vm813, %v851, 0.0
    %869 = vadd.xlane.f32.xlu0 %v868
    %v870 = vpop.xlane.xlu0 %869
    %v871 = vsel %vm813, %v853, 0.0
    %872 = vadd.xlane.f32.xlu0 %v871
    %v873 = vpop.xlane.xlu0 %872
    %v874 = vsel %vm813, %v855, 0.0
    %875 = vadd.xlane.f32.xlu0 %v874
    %v876 = vpop.xlane.xlu0 %875
    %v877 = vsel %vm813, %v857, 0.0
    %878 = vadd.xlane.f32.xlu0 %v877
    %v879 = vpop.xlane.xlu0 %878
    %v880 = vsel %vm813, %v859, 0.0
    %881 = vadd.xlane.f32.xlu0 %v880
    %v882 = vpop.xlane.xlu0 %881
    %v883 = vsel %vm813, %v861, 0.0
    %884 = vadd.xlane.f32.xlu0 %v883
    %v885 = vpop.xlane.xlu0 %884
    %v886 = vrcp.pop %v864
    %v887 = vrcp.pop %v867
    %v888 = vrcp.pop %v870
    %v889 = vrcp.pop %v873
    %v890 = vrcp.pop %v876
    %v891 = vrcp.pop %v879
    %v892 = vrcp.pop %v882
    %v893 = vrcp.pop %v885
    %v894 = vmul.f32 %v864, %v886
    %v895 = vmul.f32 %v867, %v887
    %v896 = vmul.f32 %v870, %v888
    %v897 = vmul.f32 %v873, %v889
    %v898 = vmul.f32 %v876, %v890
    %v899 = vmul.f32 %v879, %v891
    %v900 = vmul.f32 %v882, %v892
    %v901 = vmul.f32 %v885, %v893
    %v902 = vsub.f32 2.0, %v894
    %v903 = vsub.f32 2.0, %v895
    %v904 = vsub.f32 2.0, %v896
    %v905 = vsub.f32 2.0, %v897
    %v906 = vsub.f32 2.0, %v898
    %v907 = vsub.f32 2.0, %v899
    %v908 = vsub.f32 2.0, %v900
    %v909 = vsub.f32 2.0, %v901
    %v910 = vmul.f32 %v886, %v902
    %v911 = vmul.f32 %v887, %v903
    %v912 = vmul.f32 %v888, %v904
    %v913 = vmul.f32 %v889, %v905
    %v914 = vmul.f32 %v890, %v906
    %v915 = vmul.f32 %v891, %v907
    %v916 = vmul.f32 %v892, %v908
    %v917 = vmul.f32 %v893, %v909
    %v918 = vmul.f32 %v847, %v910
    %v919 = vmul.f32 %v849, %v911
    %v920 = vmul.f32 %v851, %v912
    %v921 = vmul.f32 %v853, %v913
    %v922 = vmul.f32 %v855, %v914
    %v923 = vmul.f32 %v857, %v915
    %v924 = vmul.f32 %v859, %v916
    %v925 = vmul.f32 %v861, %v917
    %v926 = vld [vmem:[#allocation7] sm:$0xff]
    %v928 = vsel %vm813, %v918, 0
    %v931 = vsel %vm813, %v919, 0
    %v934 = vsel %vm813, %v920, 0
    %v937 = vsel %vm813, %v921, 0
    %v940 = vsel %vm813, %v922, 0
    %v943 = vsel %vm813, %v923, 0
    %v946 = vsel %vm813, %v924, 0
    %v949 = vsel %vm813, %v925, 0
    %951 = vmatprep.subr.mxu0 0.0
    %952 = vmatpush1.msra.mxu0 %v926
    %953 = vmatprep.subr.mxu0 0.0
    %954 = vmatpush1.msra.mxu0 0.0
    %955 = vmatprep.subr.mxu0 0.0
    %956 = vmatpush1.msra.mxu0 0.0
    %957 = vmatprep.subr.mxu0 0.0
    %958 = vmatpush1.msra.mxu0 0.0
    %959 = vmatprep.subr.mxu0 0.0
    %960 = vmatpush1.msra.mxu0 0.0
    %961 = vmatprep.subr.mxu0 0.0
    %962 = vmatpush1.msra.mxu0 0.0
    %963 = vmatprep.subr.mxu0 0.0
    %964 = vmatpush1.msra.mxu0 0.0
    %965 = vmatprep.subr.mxu0 0.0
    %966 = vmatpush1.msra.mxu0 0.0
    %967 = vmatprep.subr.mxu0 0.0
    %968 = vmatpush1.msra.mxu0 0.0
    %969 = vmatprep.subr.mxu0 0.0
    %970 = vmatpush1.msra.mxu0 0.0
    %971 = vmatprep.subr.mxu0 0.0
    %972 = vmatpush1.msra.mxu0 0.0
    %973 = vmatprep.subr.mxu0 0.0
    %974 = vmatpush1.msra.mxu0 0.0
    %975 = vmatprep.subr.mxu0 0.0
    %976 = vmatpush1.msra.mxu0 0.0
    %977 = vmatprep.subr.mxu0 0.0
    %978 = vmatpush1.msra.mxu0 0.0
    %979 = vmatprep.subr.mxu0 0.0
    %980 = vmatpush1.msra.mxu0 0.0
    %981 = vmatprep.subr.mxu0 0.0
    %982 = vmatpush1.msra.mxu0 0.0
    %983 = vmatprep.subr.mxu0 0.0
    %984 = vmatpush1.msra.mxu0 0.0
    %985 = vmatprep.subr.mxu0 0.0
    %986 = vmatpush1.msra.mxu0 0.0
    %987 = vmatprep.subr.mxu0 0.0
    %988 = vmatpush1.msra.mxu0 0.0
    %989 = vmatprep.subr.mxu0 0.0
    %990 = vmatpush1.msra.mxu0 0.0
    %991 = vmatprep.subr.mxu0 0.0
    %992 = vmatpush1.msra.mxu0 0.0
    %993 = vmatprep.subr.mxu0 0.0
    %994 = vmatpush1.msra.mxu0 0.0
    %995 = vmatprep.subr.mxu0 0.0
    %996 = vmatpush1.msra.mxu0 0.0
    %997 = vmatprep.subr.mxu0 0.0
    %998 = vmatpush1.msra.mxu0 0.0
    %999 = vmatprep.subr.mxu0 0.0
    %1000 = vmatpush1.msra.mxu0 0.0
    %1001 = vmatprep.subr.mxu0 0.0
    %1002 = vmatpush1.msra.mxu0 0.0
    %1003 = vmatprep.subr.mxu0 0.0
    %1004 = vmatpush1.msra.mxu0 0.0
    %1005 = vmatprep.subr.mxu0 0.0
    %1006 = vmatpush1.msra.mxu0 0.0
    %1007 = vmatprep.subr.mxu0 0.0
    %1008 = vmatpush1.msra.mxu0 0.0
    %1009 = vmatprep.subr.mxu0 0.0
    %1010 = vmatpush1.msra.mxu0 0.0
    %1011 = vmatprep.subr.mxu0 0.0
    %1012 = vmatpush1.msra.mxu0 0.0
    %1013 = vmatprep.subr.mxu0 0.0
    %1014 = vmatpush1.msra.mxu0 0.0
    %1015 = vmatprep.mubr.f32.mxu0 0.0
    %1016 = vmatmul.mubr.f32.gmra.mrb[0].mxu0 %v928
    %v1017 = vpop.f32.mrb[0].mxu0
    %v1018 = vadd.f32 0.0, %v1017
    %v1019 = vpop.f32.mrb[0].mxu0
    %1020 = vmatprep.mubr.f32.mxu0 0.0
    %1021 = vmatmul.mubr.f32.gmra.mrb[0].mxu0 %v931
    %v1022 = vpop.f32.mrb[0].mxu0
    %v1023 = vadd.f32 0.0, %v1022
    %v1024 = vpop.f32.mrb[0].mxu0
    %1025 = vmatprep.mubr.f32.mxu0 0.0
    %1026 = vmatmul.mubr.f32.gmra.mrb[0].mxu0 %v934
    %v1027 = vpop.f32.mrb[0].mxu0
    %v1028 = vadd.f32 0.0, %v1027
    %v1029 = vpop.f32.mrb[0].mxu0
    %1030 = vmatprep.mubr.f32.mxu0 0.0
    %1031 = vmatmul.mubr.f32.gmra.mrb[0].mxu0 %v937
    %v1032 = vpop.f32.mrb[0].mxu0
    %v1033 = vadd.f32 0.0, %v1032
    %v1034 = vpop.f32.mrb[0].mxu0
    %1035 = vmatprep.mubr.f32.mxu0 0.0
    %1036 = vmatmul.mubr.f32.gmra.mrb[0].mxu0 %v940
    %v1037 = vpop.f32.mrb[0].mxu0
    %v1038 = vadd.f32 0.0, %v1037
    %v1039 = vpop.f32.mrb[0].mxu0
    %1040 = vmatprep.mubr.f32.mxu0 0.0
    %1041 = vmatmul.mubr.f32.gmra.mrb[0].mxu0 %v943
    %v1042 = vpop.f32.mrb[0].mxu0
    %v1043 = vadd.f32 0.0, %v1042
    %v1044 = vpop.f32.mrb[0].mxu0
    %1045 = vmatprep.mubr.f32.mxu0 0.0
    %1046 = vmatmul.mubr.f32.gmra.mrb[0].mxu0 %v946
    %v1047 = vpop.f32.mrb[0].mxu0
    %v1048 = vadd.f32 0.0, %v1047
    %v1049 = vpop.f32.mrb[0].mxu0
    %1050 = vmatprep.mubr.f32.mxu0 0.0
    %1051 = vmatmul.mubr.f32.gmra.mrb[0].mxu0 %v949
    %v1052 = vpop.f32.mrb[0].mxu0
    %v1053 = vadd.f32 0.0, %v1052
    %v1054 = vpop.f32.mrb[0].mxu0
    %1055 = vdwg.mxu0
    %v1057 = vsel %vm813, %v1018, 0
    %1059 = vmatprep.subr.mxu0 0.0
    %1060 = vmatpush1.msra.mxu0 %v87
    %1061 = vmatprep.subr.mxu0 0.0
    %1062 = vmatpush1.msra.mxu0 0.0
    %1063 = vmatprep.subr.mxu0 0.0
    %1064 = vmatpush1.msra.mxu0 0.0
    %1065 = vmatprep.subr.mxu0 0.0
    %1066 = vmatpush1.msra.mxu0 0.0
    %1067 = vmatprep.subr.mxu0 0.0
    %1068 = vmatpush1.msra.mxu0 0.0
    %1069 = vmatprep.subr.mxu0 0.0
    %1070 = vmatpush1.msra.mxu0 0.0
    %1071 = vmatprep.subr.mxu0 0.0
    %1072 = vmatpush1.msra.mxu0 0.0
    %1073 = vmatprep.subr.mxu0 0.0
    %1074 = vmatpush1.msra.mxu0 0.0
    %1075 = vmatprep.subr.mxu0 0.0
    %1076 = vmatpush1.msra.mxu0 0.0
    %1077 = vmatprep.subr.mxu0 0.0
    %1078 = vmatpush1.msra.mxu0 0.0
    %1079 = vmatprep.subr.mxu0 0.0
    %1080 = vmatpush1.msra.mxu0 0.0
    %1081 = vmatprep.subr.mxu0 0.0
    %1082 = vmatpush1.msra.mxu0 0.0
    %1083 = vmatprep.subr.mxu0 0.0
    %1084 = vmatpush1.msra.mxu0 0.0
    %1085 = vmatprep.subr.mxu0 0.0
    %1086 = vmatpush1.msra.mxu0 0.0
    %1087 = vmatprep.subr.mxu0 0.0
    %1088 = vmatpush1.msra.mxu0 0.0
    %1089 = vmatprep.subr.mxu0 0.0
    %1090 = vmatpush1.msra.mxu0 0.0
    %1091 = vmatprep.subr.mxu0 0.0
    %1092 = vmatpush1.msra.mxu0 0.0
    %1093 = vmatprep.subr.mxu0 0.0
    %1094 = vmatpush1.msra.mxu0 0.0
    %1095 = vmatprep.subr.mxu0 0.0
    %1096 = vmatpush1.msra.mxu0 0.0
    %1097 = vmatprep.subr.mxu0 0.0
    %1098 = vmatpush1.msra.mxu0 0.0
    %1099 = vmatprep.subr.mxu0 0.0
    %1100 = vmatpush1.msra.mxu0 0.0
    %1101 = vmatprep.subr.mxu0 0.0
    %1102 = vmatpush1.msra.mxu0 0.0
    %1103 = vmatprep.subr.mxu0 0.0
    %1104 = vmatpush1.msra.mxu0 0.0
    %1105 = vmatprep.subr.mxu0 0.0
    %1106 = vmatpush1.msra.mxu0 0.0
    %1107 = vmatprep.subr.mxu0 0.0
    %1108 = vmatpush1.msra.mxu0 0.0
    %1109 = vmatprep.subr.mxu0 0.0
    %1110 = vmatpush1.msra.mxu0 0.0
    %1111 = vmatprep.subr.mxu0 0.0
    %1112 = vmatpush1.msra.mxu0 0.0
    %1113 = vmatprep.subr.mxu0 0.0
    %1114 = vmatpush1.msra.mxu0 0.0
    %1115 = vmatprep.subr.mxu0 0.0
    %1116 = vmatpush1.msra.mxu0 0.0
    %1117 = vmatprep.subr.mxu0 0.0
    %1118 = vmatpush1.msra.mxu0 0.0
    %1119 = vmatprep.subr.mxu0 0.0
    %1120 = vmatpush1.msra.mxu0 0.0
    %1121 = vmatprep.subr.mxu0 0.0
    %1122 = vmatpush1.msra.mxu0 0.0
    %1123 = vmatprep.mubr.f32.mxu0 0.0
    %1124 = vmatmul.mubr.f32.gmra.mrb[0].mxu0 %v1057
    %v1125 = vpop.f32.mrb[0].mxu0
    %v1126 = vadd.f32 0.0, %v1125
    %v1127 = vpop.f32.mrb[0].mxu0
    %1128 = vdwg.mxu0
    %v1130 = vsel %vm813, %v1023, 0
    %1132 = vmatprep.subr.mxu0 0.0
    %1133 = vmatpush1.msra.mxu0 %v88
    %1134 = vmatprep.subr.mxu0 0.0
    %1135 = vmatpush1.msra.mxu0 0.0
    %1136 = vmatprep.subr.mxu0 0.0
    %1137 = vmatpush1.msra.mxu0 0.0
    %1138 = vmatprep.subr.mxu0 0.0
    %1139 = vmatpush1.msra.mxu0 0.0
    %1140 = vmatprep.subr.mxu0 0.0
    %1141 = vmatpush1.msra.mxu0 0.0
    %1142 = vmatprep.subr.mxu0 0.0
    %1143 = vmatpush1.msra.mxu0 0.0
    %1144 = vmatprep.subr.mxu0 0.0
    %1145 = vmatpush1.msra.mxu0 0.0
    %1146 = vmatprep.subr.mxu0 0.0
    %1147 = vmatpush1.msra.mxu0 0.0
    %1148 = vmatprep.subr.mxu0 0.0
    %1149 = vmatpush1.msra.mxu0 0.0
    %1150 = vmatprep.subr.mxu0 0.0
    %1151 = vmatpush1.msra.mxu0 0.0
    %1152 = vmatprep.subr.mxu0 0.0
    %1153 = vmatpush1.msra.mxu0 0.0
    %1154 = vmatprep.subr.mxu0 0.0
    %1155 = vmatpush1.msra.mxu0 0.0
    %1156 = vmatprep.subr.mxu0 0.0
    %1157 = vmatpush1.msra.mxu0 0.0
    %1158 = vmatprep.subr.mxu0 0.0
    %1159 = vmatpush1.msra.mxu0 0.0
    %1160 = vmatprep.subr.mxu0 0.0
    %1161 = vmatpush1.msra.mxu0 0.0
    %1162 = vmatprep.subr.mxu0 0.0
    %1163 = vmatpush1.msra.mxu0 0.0
    %1164 = vmatprep.subr.mxu0 0.0
    %1165 = vmatpush1.msra.mxu0 0.0
    %1166 = vmatprep.subr.mxu0 0.0
    %1167 = vmatpush1.msra.mxu0 0.0
    %1168 = vmatprep.subr.mxu0 0.0
    %1169 = vmatpush1.msra.mxu0 0.0
    %1170 = vmatprep.subr.mxu0 0.0
    %1171 = vmatpush1.msra.mxu0 0.0
    %1172 = vmatprep.subr.mxu0 0.0
    %1173 = vmatpush1.msra.mxu0 0.0
    %1174 = vmatprep.subr.mxu0 0.0
    %1175 = vmatpush1.msra.mxu0 0.0
    %1176 = vmatprep.subr.mxu0 0.0
    %1177 = vmatpush1.msra.mxu0 0.0
    %1178 = vmatprep.subr.mxu0 0.0
    %1179 = vmatpush1.msra.mxu0 0.0
    %1180 = vmatprep.subr.mxu0 0.0
    %1181 = vmatpush1.msra.mxu0 0.0
    %1182 = vmatprep.subr.mxu0 0.0
    %1183 = vmatpush1.msra.mxu0 0.0
    %1184 = vmatprep.subr.mxu0 0.0
    %1185 = vmatpush1.msra.mxu0 0.0
    %1186 = vmatprep.subr.mxu0 0.0
    %1187 = vmatpush1.msra.mxu0 0.0
    %1188 = vmatprep.subr.mxu0 0.0
    %1189 = vmatpush1.msra.mxu0 0.0
    %1190 = vmatprep.subr.mxu0 0.0
    %1191 = vmatpush1.msra.mxu0 0.0
    %1192 = vmatprep.subr.mxu0 0.0
    %1193 = vmatpush1.msra.mxu0 0.0
    %1194 = vmatprep.subr.mxu0 0.0
    %1195 = vmatpush1.msra.mxu0 0.0
    %1196 = vmatprep.mubr.f32.mxu0 0.0
    %1197 = vmatmul.mubr.f32.gmra.mrb[0].mxu0 %v1130
    %v1198 = vpop.f32.mrb[0].mxu0
    %v1199 = vadd.f32 0.0, %v1198
    %v1200 = vpop.f32.mrb[0].mxu0
    %1201 = vdwg.mxu0
    %v1203 = vsel %vm813, %v1028, 0
    %1205 = vmatprep.subr.mxu0 0.0
    %1206 = vmatpush1.msra.mxu0 %v89
    %1207 = vmatprep.subr.mxu0 0.0
    %1208 = vmatpush1.msra.mxu0 0.0
    %1209 = vmatprep.subr.mxu0 0.0
    %1210 = vmatpush1.msra.mxu0 0.0
    %1211 = vmatprep.subr.mxu0 0.0
    %1212 = vmatpush1.msra.mxu0 0.0
    %1213 = vmatprep.subr.mxu0 0.0
    %1214 = vmatpush1.msra.mxu0 0.0
    %1215 = vmatprep.subr.mxu0 0.0
    %1216 = vmatpush1.msra.mxu0 0.0
    %1217 = vmatprep.subr.mxu0 0.0
    %1218 = vmatpush1.msra.mxu0 0.0
    %1219 = vmatprep.subr.mxu0 0.0
    %1220 = vmatpush1.msra.mxu0 0.0
    %1221 = vmatprep.subr.mxu0 0.0
    %1222 = vmatpush1.msra.mxu0 0.0
    %1223 = vmatprep.subr.mxu0 0.0
    %1224 = vmatpush1.msra.mxu0 0.0
    %1225 = vmatprep.subr.mxu0 0.0
    %1226 = vmatpush1.msra.mxu0 0.0
    %1227 = vmatprep.subr.mxu0 0.0
    %1228 = vmatpush1.msra.mxu0 0.0
    %1229 = vmatprep.subr.mxu0 0.0
    %1230 = vmatpush1.msra.mxu0 0.0
    %1231 = vmatprep.subr.mxu0 0.0
    %1232 = vmatpush1.msra.mxu0 0.0
    %1233 = vmatprep.subr.mxu0 0.0
    %1234 = vmatpush1.msra.mxu0 0.0
    %1235 = vmatprep.subr.mxu0 0.0
    %1236 = vmatpush1.msra.mxu0 0.0
    %1237 = vmatprep.subr.mxu0 0.0
    %1238 = vmatpush1.msra.mxu0 0.0
    %1239 = vmatprep.subr.mxu0 0.0
    %1240 = vmatpush1.msra.mxu0 0.0
    %1241 = vmatprep.subr.mxu0 0.0
    %1242 = vmatpush1.msra.mxu0 0.0
    %1243 = vmatprep.subr.mxu0 0.0
    %1244 = vmatpush1.msra.mxu0 0.0
    %1245 = vmatprep.subr.mxu0 0.0
    %1246 = vmatpush1.msra.mxu0 0.0
    %1247 = vmatprep.subr.mxu0 0.0
    %1248 = vmatpush1.msra.mxu0 0.0
    %1249 = vmatprep.subr.mxu0 0.0
    %1250 = vmatpush1.msra.mxu0 0.0
    %1251 = vmatprep.subr.mxu0 0.0
    %1252 = vmatpush1.msra.mxu0 0.0
    %1253 = vmatprep.subr.mxu0 0.0
    %1254 = vmatpush1.msra.mxu0 0.0
    %1255 = vmatprep.subr.mxu0 0.0
    %1256 = vmatpush1.msra.mxu0 0.0
    %1257 = vmatprep.subr.mxu0 0.0
    %1258 = vmatpush1.msra.mxu0 0.0
    %1259 = vmatprep.subr.mxu0 0.0
    %1260 = vmatpush1.msra.mxu0 0.0
    %1261 = vmatprep.subr.mxu0 0.0
    %1262 = vmatpush1.msra.mxu0 0.0
    %1263 = vmatprep.subr.mxu0 0.0
    %1264 = vmatpush1.msra.mxu0 0.0
    %1265 = vmatprep.subr.mxu0 0.0
    %1266 = vmatpush1.msra.mxu0 0.0
    %1267 = vmatprep.subr.mxu0 0.0
    %1268 = vmatpush1.msra.mxu0 0.0
    %1269 = vmatprep.mubr.f32.mxu0 0.0
    %1270 = vmatmul.mubr.f32.gmra.mrb[0].mxu0 %v1203
    %v1271 = vpop.f32.mrb[0].mxu0
    %v1272 = vadd.f32 0.0, %v1271
    %v1273 = vpop.f32.mrb[0].mxu0
    %1274 = vdwg.mxu0
    %v1276 = vsel %vm813, %v1033, 0
    %1278 = vmatprep.subr.mxu0 0.0
    %1279 = vmatpush1.msra.mxu0 %v90
    %1280 = vmatprep.subr.mxu0 0.0
    %1281 = vmatpush1.msra.mxu0 0.0
    %1282 = vmatprep.subr.mxu0 0.0
    %1283 = vmatpush1.msra.mxu0 0.0
    %1284 = vmatprep.subr.mxu0 0.0
    %1285 = vmatpush1.msra.mxu0 0.0
    %1286 = vmatprep.subr.mxu0 0.0
    %1287 = vmatpush1.msra.mxu0 0.0
    %1288 = vmatprep.subr.mxu0 0.0
    %1289 = vmatpush1.msra.mxu0 0.0
    %1290 = vmatprep.subr.mxu0 0.0
    %1291 = vmatpush1.msra.mxu0 0.0
    %1292 = vmatprep.subr.mxu0 0.0
    %1293 = vmatpush1.msra.mxu0 0.0
    %1294 = vmatprep.subr.mxu0 0.0
    %1295 = vmatpush1.msra.mxu0 0.0
    %1296 = vmatprep.subr.mxu0 0.0
    %1297 = vmatpush1.msra.mxu0 0.0
    %1298 = vmatprep.subr.mxu0 0.0
    %1299 = vmatpush1.msra.mxu0 0.0
    %1300 = vmatprep.subr.mxu0 0.0
    %1301 = vmatpush1.msra.mxu0 0.0
    %1302 = vmatprep.subr.mxu0 0.0
    %1303 = vmatpush1.msra.mxu0 0.0
    %1304 = vmatprep.subr.mxu0 0.0
    %1305 = vmatpush1.msra.mxu0 0.0
    %1306 = vmatprep.subr.mxu0 0.0
    %1307 = vmatpush1.msra.mxu0 0.0
    %1308 = vmatprep.subr.mxu0 0.0
    %1309 = vmatpush1.msra.mxu0 0.0
    %1310 = vmatprep.subr.mxu0 0.0
    %1311 = vmatpush1.msra.mxu0 0.0
    %1312 = vmatprep.subr.mxu0 0.0
    %1313 = vmatpush1.msra.mxu0 0.0
    %1314 = vmatprep.subr.mxu0 0.0
    %1315 = vmatpush1.msra.mxu0 0.0
    %1316 = vmatprep.subr.mxu0 0.0
    %1317 = vmatpush1.msra.mxu0 0.0
    %1318 = vmatprep.subr.mxu0 0.0
    %1319 = vmatpush1.msra.mxu0 0.0
    %1320 = vmatprep.subr.mxu0 0.0
    %1321 = vmatpush1.msra.mxu0 0.0
    %1322 = vmatprep.subr.mxu0 0.0
    %1323 = vmatpush1.msra.mxu0 0.0
    %1324 = vmatprep.subr.mxu0 0.0
    %1325 = vmatpush1.msra.mxu0 0.0
    %1326 = vmatprep.subr.mxu0 0.0
    %1327 = vmatpush1.msra.mxu0 0.0
    %1328 = vmatprep.subr.mxu0 0.0
    %1329 = vmatpush1.msra.mxu0 0.0
    %1330 = vmatprep.subr.mxu0 0.0
    %1331 = vmatpush1.msra.mxu0 0.0
    %1332 = vmatprep.subr.mxu0 0.0
    %1333 = vmatpush1.msra.mxu0 0.0
    %1334 = vmatprep.subr.mxu0 0.0
    %1335 = vmatpush1.msra.mxu0 0.0
    %1336 = vmatprep.subr.mxu0 0.0
    %1337 = vmatpush1.msra.mxu0 0.0
    %1338 = vmatprep.subr.mxu0 0.0
    %1339 = vmatpush1.msra.mxu0 0.0
    %1340 = vmatprep.subr.mxu0 0.0
    %1341 = vmatpush1.msra.mxu0 0.0
    %1342 = vmatprep.mubr.f32.mxu0 0.0
    %1343 = vmatmul.mubr.f32.gmra.mrb[0].mxu0 %v1276
    %v1344 = vpop.f32.mrb[0].mxu0
    %v1345 = vadd.f32 0.0, %v1344
    %v1346 = vpop.f32.mrb[0].mxu0
    %1347 = vdwg.mxu0
    %v1349 = vsel %vm813, %v1038, 0
    %1351 = vmatprep.subr.mxu0 0.0
    %1352 = vmatpush1.msra.mxu0 %v91
    %1353 = vmatprep.subr.mxu0 0.0
    %1354 = vmatpush1.msra.mxu0 0.0
    %1355 = vmatprep.subr.mxu0 0.0
    %1356 = vmatpush1.msra.mxu0 0.0
    %1357 = vmatprep.subr.mxu0 0.0
    %1358 = vmatpush1.msra.mxu0 0.0
    %1359 = vmatprep.subr.mxu0 0.0
    %1360 = vmatpush1.msra.mxu0 0.0
    %1361 = vmatprep.subr.mxu0 0.0
    %1362 = vmatpush1.msra.mxu0 0.0
    %1363 = vmatprep.subr.mxu0 0.0
    %1364 = vmatpush1.msra.mxu0 0.0
    %1365 = vmatprep.subr.mxu0 0.0
    %1366 = vmatpush1.msra.mxu0 0.0
    %1367 = vmatprep.subr.mxu0 0.0
    %1368 = vmatpush1.msra.mxu0 0.0
    %1369 = vmatprep.subr.mxu0 0.0
    %1370 = vmatpush1.msra.mxu0 0.0
    %1371 = vmatprep.subr.mxu0 0.0
    %1372 = vmatpush1.msra.mxu0 0.0
    %1373 = vmatprep.subr.mxu0 0.0
    %1374 = vmatpush1.msra.mxu0 0.0
    %1375 = vmatprep.subr.mxu0 0.0
    %1376 = vmatpush1.msra.mxu0 0.0
    %1377 = vmatprep.subr.mxu0 0.0
    %1378 = vmatpush1.msra.mxu0 0.0
    %1379 = vmatprep.subr.mxu0 0.0
    %1380 = vmatpush1.msra.mxu0 0.0
    %1381 = vmatprep.subr.mxu0 0.0
    %1382 = vmatpush1.msra.mxu0 0.0
    %1383 = vmatprep.subr.mxu0 0.0
    %1384 = vmatpush1.msra.mxu0 0.0
    %1385 = vmatprep.subr.mxu0 0.0
    %1386 = vmatpush1.msra.mxu0 0.0
    %1387 = vmatprep.subr.mxu0 0.0
    %1388 = vmatpush1.msra.mxu0 0.0
    %1389 = vmatprep.subr.mxu0 0.0
    %1390 = vmatpush1.msra.mxu0 0.0
    %1391 = vmatprep.subr.mxu0 0.0
    %1392 = vmatpush1.msra.mxu0 0.0
    %1393 = vmatprep.subr.mxu0 0.0
    %1394 = vmatpush1.msra.mxu0 0.0
    %1395 = vmatprep.subr.mxu0 0.0
    %1396 = vmatpush1.msra.mxu0 0.0
    %1397 = vmatprep.subr.mxu0 0.0
    %1398 = vmatpush1.msra.mxu0 0.0
    %1399 = vmatprep.subr.mxu0 0.0
    %1400 = vmatpush1.msra.mxu0 0.0
    %1401 = vmatprep.subr.mxu0 0.0
    %1402 = vmatpush1.msra.mxu0 0.0
    %1403 = vmatprep.subr.mxu0 0.0
    %1404 = vmatpush1.msra.mxu0 0.0
    %1405 = vmatprep.subr.mxu0 0.0
    %1406 = vmatpush1.msra.mxu0 0.0
    %1407 = vmatprep.subr.mxu0 0.0
    %1408 = vmatpush1.msra.mxu0 0.0
    %1409 = vmatprep.subr.mxu0 0.0
    %1410 = vmatpush1.msra.mxu0 0.0
    %1411 = vmatprep.subr.mxu0 0.0
    %1412 = vmatpush1.msra.mxu0 0.0
    %1413 = vmatprep.subr.mxu0 0.0
    %1414 = vmatpush1.msra.mxu0 0.0
    %1415 = vmatprep.mubr.f32.mxu0 0.0
    %1416 = vmatmul.mubr.f32.gmra.mrb[0].mxu0 %v1349
    %v1417 = vpop.f32.mrb[0].mxu0
    %v1418 = vadd.f32 0.0, %v1417
    %v1419 = vpop.f32.mrb[0].mxu0
    %1420 = vdwg.mxu0
    %v1422 = vsel %vm813, %v1043, 0
    %1424 = vmatprep.subr.mxu0 0.0
    %1425 = vmatpush1.msra.mxu0 %v92
    %1426 = vmatprep.subr.mxu0 0.0
    %1427 = vmatpush1.msra.mxu0 0.0
    %1428 = vmatprep.subr.mxu0 0.0
    %1429 = vmatpush1.msra.mxu0 0.0
    %1430 = vmatprep.subr.mxu0 0.0
    %1431 = vmatpush1.msra.mxu0 0.0
    %1432 = vmatprep.subr.mxu0 0.0
    %1433 = vmatpush1.msra.mxu0 0.0
    %1434 = vmatprep.subr.mxu0 0.0
    %1435 = vmatpush1.msra.mxu0 0.0
    %1436 = vmatprep.subr.mxu0 0.0
    %1437 = vmatpush1.msra.mxu0 0.0
    %1438 = vmatprep.subr.mxu0 0.0
    %1439 = vmatpush1.msra.mxu0 0.0
    %1440 = vmatprep.subr.mxu0 0.0
    %1441 = vmatpush1.msra.mxu0 0.0
    %1442 = vmatprep.subr.mxu0 0.0
    %1443 = vmatpush1.msra.mxu0 0.0
    %1444 = vmatprep.subr.mxu0 0.0
    %1445 = vmatpush1.msra.mxu0 0.0
    %1446 = vmatprep.subr.mxu0 0.0
    %1447 = vmatpush1.msra.mxu0 0.0
    %1448 = vmatprep.subr.mxu0 0.0
    %1449 = vmatpush1.msra.mxu0 0.0
    %1450 = vmatprep.subr.mxu0 0.0
    %1451 = vmatpush1.msra.mxu0 0.0
    %1452 = vmatprep.subr.mxu0 0.0
    %1453 = vmatpush1.msra.mxu0 0.0
    %1454 = vmatprep.subr.mxu0 0.0
    %1455 = vmatpush1.msra.mxu0 0.0
    %1456 = vmatprep.subr.mxu0 0.0
    %1457 = vmatpush1.msra.mxu0 0.0
    %1458 = vmatprep.subr.mxu0 0.0
    %1459 = vmatpush1.msra.mxu0 0.0
    %1460 = vmatprep.subr.mxu0 0.0
    %1461 = vmatpush1.msra.mxu0 0.0
    %1462 = vmatprep.subr.mxu0 0.0
    %1463 = vmatpush1.msra.mxu0 0.0
    %1464 = vmatprep.subr.mxu0 0.0
    %1465 = vmatpush1.msra.mxu0 0.0
    %1466 = vmatprep.subr.mxu0 0.0
    %1467 = vmatpush1.msra.mxu0 0.0
    %1468 = vmatprep.subr.mxu0 0.0
    %1469 = vmatpush1.msra.mxu0 0.0
    %1470 = vmatprep.subr.mxu0 0.0
    %1471 = vmatpush1.msra.mxu0 0.0
    %1472 = vmatprep.subr.mxu0 0.0
    %1473 = vmatpush1.msra.mxu0 0.0
    %1474 = vmatprep.subr.mxu0 0.0
    %1475 = vmatpush1.msra.mxu0 0.0
    %1476 = vmatprep.subr.mxu0 0.0
    %1477 = vmatpush1.msra.mxu0 0.0
    %1478 = vmatprep.subr.mxu0 0.0
    %1479 = vmatpush1.msra.mxu0 0.0
    %1480 = vmatprep.subr.mxu0 0.0
    %1481 = vmatpush1.msra.mxu0 0.0
    %1482 = vmatprep.subr.mxu0 0.0
    %1483 = vmatpush1.msra.mxu0 0.0
    %1484 = vmatprep.subr.mxu0 0.0
    %1485 = vmatpush1.msra.mxu0 0.0
    %1486 = vmatprep.subr.mxu0 0.0
    %1487 = vmatpush1.msra.mxu0 0.0
    %1488 = vmatprep.mubr.f32.mxu0 0.0
    %1489 = vmatmul.mubr.f32.gmra.mrb[0].mxu0 %v1422
    %v1490 = vpop.f32.mrb[0].mxu0
    %v1491 = vadd.f32 0.0, %v1490
    %v1492 = vpop.f32.mrb[0].mxu0
    %1493 = vdwg.mxu0
    %v1495 = vsel %vm813, %v1048, 0
    %1497 = vmatprep.subr.mxu0 0.0
    %1498 = vmatpush1.msra.mxu0 %v93
    %1499 = vmatprep.subr.mxu0 0.0
    %1500 = vmatpush1.msra.mxu0 0.0
    %1501 = vmatprep.subr.mxu0 0.0
    %1502 = vmatpush1.msra.mxu0 0.0
    %1503 = vmatprep.subr.mxu0 0.0
    %1504 = vmatpush1.msra.mxu0 0.0
    %1505 = vmatprep.subr.mxu0 0.0
    %1506 = vmatpush1.msra.mxu0 0.0
    %1507 = vmatprep.subr.mxu0 0.0
    %1508 = vmatpush1.msra.mxu0 0.0
    %1509 = vmatprep.subr.mxu0 0.0
    %1510 = vmatpush1.msra.mxu0 0.0
    %1511 = vmatprep.subr.mxu0 0.0
    %1512 = vmatpush1.msra.mxu0 0.0
    %1513 = vmatprep.subr.mxu0 0.0
    %1514 = vmatpush1.msra.mxu0 0.0
    %1515 = vmatprep.subr.mxu0 0.0
    %1516 = vmatpush1.msra.mxu0 0.0
    %1517 = vmatprep.subr.mxu0 0.0
    %1518 = vmatpush1.msra.mxu0 0.0
    %1519 = vmatprep.subr.mxu0 0.0
    %1520 = vmatpush1.msra.mxu0 0.0
    %1521 = vmatprep.subr.mxu0 0.0
    %1522 = vmatpush1.msra.mxu0 0.0
    %1523 = vmatprep.subr.mxu0 0.0
    %1524 = vmatpush1.msra.mxu0 0.0
    %1525 = vmatprep.subr.mxu0 0.0
    %1526 = vmatpush1.msra.mxu0 0.0
    %1527 = vmatprep.subr.mxu0 0.0
    %1528 = vmatpush1.msra.mxu0 0.0
    %1529 = vmatprep.subr.mxu0 0.0
    %1530 = vmatpush1.msra.mxu0 0.0
    %1531 = vmatprep.subr.mxu0 0.0
    %1532 = vmatpush1.msra.mxu0 0.0
    %1533 = vmatprep.subr.mxu0 0.0
    %1534 = vmatpush1.msra.mxu0 0.0
    %1535 = vmatprep.subr.mxu0 0.0
    %1536 = vmatpush1.msra.mxu0 0.0
    %1537 = vmatprep.subr.mxu0 0.0
    %1538 = vmatpush1.msra.mxu0 0.0
    %1539 = vmatprep.subr.mxu0 0.0
    %1540 = vmatpush1.msra.mxu0 0.0
    %1541 = vmatprep.subr.mxu0 0.0
    %1542 = vmatpush1.msra.mxu0 0.0
    %1543 = vmatprep.subr.mxu0 0.0
    %1544 = vmatpush1.msra.mxu0 0.0
    %1545 = vmatprep.subr.mxu0 0.0
    %1546 = vmatpush1.msra.mxu0 0.0
    %1547 = vmatprep.subr.mxu0 0.0
    %1548 = vmatpush1.msra.mxu0 0.0
    %1549 = vmatprep.subr.mxu0 0.0
    %1550 = vmatpush1.msra.mxu0 0.0
    %1551 = vmatprep.subr.mxu0 0.0
    %1552 = vmatpush1.msra.mxu0 0.0
    %1553 = vmatprep.subr.mxu0 0.0
    %1554 = vmatpush1.msra.mxu0 0.0
    %1555 = vmatprep.subr.mxu0 0.0
    %1556 = vmatpush1.msra.mxu0 0.0
    %1557 = vmatprep.subr.mxu0 0.0
    %1558 = vmatpush1.msra.mxu0 0.0
    %1559 = vmatprep.subr.mxu0 0.0
    %1560 = vmatpush1.msra.mxu0 0.0
    %1561 = vmatprep.mubr.f32.mxu0 0.0
    %1562 = vmatmul.mubr.f32.gmra.mrb[0].mxu0 %v1495
    %v1563 = vpop.f32.mrb[0].mxu0
    %v1564 = vadd.f32 0.0, %v1563
    %v1565 = vpop.f32.mrb[0].mxu0
    %1566 = vdwg.mxu0
    %v1568 = vsel %vm813, %v1053, 0
    %1570 = vmatprep.subr.mxu0 0.0
    %1571 = vmatpush1.msra.mxu0 %v94
    %1572 = vmatprep.subr.mxu0 0.0
    %1573 = vmatpush1.msra.mxu0 0.0
    %1574 = vmatprep.subr.mxu0 0.0
    %1575 = vmatpush1.msra.mxu0 0.0
    %1576 = vmatprep.subr.mxu0 0.0
    %1577 = vmatpush1.msra.mxu0 0.0
    %1578 = vmatprep.subr.mxu0 0.0
    %1579 = vmatpush1.msra.mxu0 0.0
    %1580 = vmatprep.subr.mxu0 0.0
    %1581 = vmatpush1.msra.mxu0 0.0
    %1582 = vmatprep.subr.mxu0 0.0
    %1583 = vmatpush1.msra.mxu0 0.0
    %1584 = vmatprep.subr.mxu0 0.0
    %1585 = vmatpush1.msra.mxu0 0.0
    %1586 = vmatprep.subr.mxu0 0.0
    %1587 = vmatpush1.msra.mxu0 0.0
    %1588 = vmatprep.subr.mxu0 0.0
    %1589 = vmatpush1.msra.mxu0 0.0
    %1590 = vmatprep.subr.mxu0 0.0
    %1591 = vmatpush1.msra.mxu0 0.0
    %1592 = vmatprep.subr.mxu0 0.0
    %1593 = vmatpush1.msra.mxu0 0.0
    %1594 = vmatprep.subr.mxu0 0.0
    %1595 = vmatpush1.msra.mxu0 0.0
    %1596 = vmatprep.subr.mxu0 0.0
    %1597 = vmatpush1.msra.mxu0 0.0
    %1598 = vmatprep.subr.mxu0 0.0
    %1599 = vmatpush1.msra.mxu0 0.0
    %1600 = vmatprep.subr.mxu0 0.0
    %1601 = vmatpush1.msra.mxu0 0.0
    %1602 = vmatprep.subr.mxu0 0.0
    %1603 = vmatpush1.msra.mxu0 0.0
    %1604 = vmatprep.subr.mxu0 0.0
    %1605 = vmatpush1.msra.mxu0 0.0
    %1606 = vmatprep.subr.mxu0 0.0
    %1607 = vmatpush1.msra.mxu0 0.0
    %1608 = vmatprep.subr.mxu0 0.0
    %1609 = vmatpush1.msra.mxu0 0.0
    %1610 = vmatprep.subr.mxu0 0.0
    %1611 = vmatpush1.msra.mxu0 0.0
    %1612 = vmatprep.subr.mxu0 0.0
    %1613 = vmatpush1.msra.mxu0 0.0
    %1614 = vmatprep.subr.mxu0 0.0
    %1615 = vmatpush1.msra.mxu0 0.0
    %1616 = vmatprep.subr.mxu0 0.0
    %1617 = vmatpush1.msra.mxu0 0.0
    %1618 = vmatprep.subr.mxu0 0.0
    %1619 = vmatpush1.msra.mxu0 0.0
    %1620 = vmatprep.subr.mxu0 0.0
    %1621 = vmatpush1.msra.mxu0 0.0
    %1622 = vmatprep.subr.mxu0 0.0
    %1623 = vmatpush1.msra.mxu0 0.0
    %1624 = vmatprep.subr.mxu0 0.0
    %1625 = vmatpush1.msra.mxu0 0.0
    %1626 = vmatprep.subr.mxu0 0.0
    %1627 = vmatpush1.msra.mxu0 0.0
    %1628 = vmatprep.subr.mxu0 0.0
    %1629 = vmatpush1.msra.mxu0 0.0
    %1630 = vmatprep.subr.mxu0 0.0
    %1631 = vmatpush1.msra.mxu0 0.0
    %1632 = vmatprep.subr.mxu0 0.0
    %1633 = vmatpush1.msra.mxu0 0.0
    %1634 = vmatprep.mubr.f32.mxu0 0.0
    %1635 = vmatmul.mubr.f32.gmra.mrb[0].mxu0 %v1568
    %v1636 = vpop.f32.mrb[0].mxu0
    %v1637 = vadd.f32 0.0, %v1636
    %v1638 = vpop.f32.mrb[0].mxu0
    %1639 = vdwg.mxu0
    %v1640 = vand.u32 2147483647, %v191
    %v1641 = vand.u32 2147483647, %v196
    %v1642 = vand.u32 2147483647, %v201
    %v1643 = vand.u32 2147483647, %v206
    %v1644 = vand.u32 2147483647, %v211
    %v1645 = vand.u32 2147483647, %v216
    %v1646 = vand.u32 2147483647, %v221
    %v1647 = vand.u32 2147483647, %v226
    %vm1648 = vcmask 523520
    %v1649 = vsel %vm1648, %v1640, 0.0
    %v1650 = vrot.slane %v1649, 4
    %v1651 = vadd.f32 %v1649, %v1650
    %v1652 = vrot.slane %v1651, 2
    %v1653 = vadd.f32 %v1651, %v1652
    %v1654 = vrot.slane %v1653, 1
    %v1655 = vadd.f32 %v1653, %v1654
    %v1656 = vsel %vm1648, %v1641, 0.0
    %v1657 = vrot.slane %v1656, 4
    %v1658 = vadd.f32 %v1656, %v1657
    %v1659 = vrot.slane %v1658, 2
    %v1660 = vadd.f32 %v1658, %v1659
    %v1661 = vrot.slane %v1660, 1
    %v1662 = vadd.f32 %v1660, %v1661
    %v1663 = vsel %vm1648, %v1642, 0.0
    %v1664 = vrot.slane %v1663, 4
    %v1665 = vadd.f32 %v1663, %v1664
    %v1666 = vrot.slane %v1665, 2
    %v1667 = vadd.f32 %v1665, %v1666
    %v1668 = vrot.slane %v1667, 1
    %v1669 = vadd.f32 %v1667, %v1668
    %v1670 = vsel %vm1648, %v1643, 0.0
    %v1671 = vrot.slane %v1670, 4
    %v1672 = vadd.f32 %v1670, %v1671
    %v1673 = vrot.slane %v1672, 2
    %v1674 = vadd.f32 %v1672, %v1673
    %v1675 = vrot.slane %v1674, 1
    %v1676 = vadd.f32 %v1674, %v1675
    %v1677 = vsel %vm1648, %v1644, 0.0
    %v1678 = vrot.slane %v1677, 4
    %v1679 = vadd.f32 %v1677, %v1678
    %v1680 = vrot.slane %v1679, 2
    %v1681 = vadd.f32 %v1679, %v1680
    %v1682 = vrot.slane %v1681, 1
    %v1683 = vadd.f32 %v1681, %v1682
    %v1684 = vsel %vm1648, %v1645, 0.0
    %v1685 = vrot.slane %v1684, 4
    %v1686 = vadd.f32 %v1684, %v1685
    %v1687 = vrot.slane %v1686, 2
    %v1688 = vadd.f32 %v1686, %v1687
    %v1689 = vrot.slane %v1688, 1
    %v1690 = vadd.f32 %v1688, %v1689
    %v1691 = vsel %vm1648, %v1646, 0.0
    %v1692 = vrot.slane %v1691, 4
    %v1693 = vadd.f32 %v1691, %v1692
    %v1694 = vrot.slane %v1693, 2
    %v1695 = vadd.f32 %v1693, %v1694
    %v1696 = vrot.slane %v1695, 1
    %v1697 = vadd.f32 %v1695, %v1696
    %v1698 = vsel %vm1648, %v1647, 0.0
    %v1699 = vrot.slane %v1698, 4
    %v1700 = vadd.f32 %v1698, %v1699
    %v1701 = vrot.slane %v1700, 2
    %v1702 = vadd.f32 %v1700, %v1701
    %v1703 = vrot.slane %v1702, 1
    %v1704 = vadd.f32 %v1702, %v1703
    %v1705 = vrcp.pop 8.0
    %v1706 = vmul.f32 %v1655, %v1705
    %v1707 = vmul.f32 %v1662, %v1705
    %v1708 = vmul.f32 %v1669, %v1705
    %v1709 = vmul.f32 %v1676, %v1705
    %v1710 = vmul.f32 %v1683, %v1705
    %v1711 = vmul.f32 %v1690, %v1705
    %v1712 = vmul.f32 %v1697, %v1705
    %v1713 = vmul.f32 %v1704, %v1705
    %v1714 = vxor.u32 %v1706, 2147483648
    %v1715 = vxor.u32 %v1707, 2147483648
    %v1716 = vxor.u32 %v1708, 2147483648
    %v1717 = vxor.u32 %v1709, 2147483648
    %v1718 = vxor.u32 %v1710, 2147483648
    %v1719 = vxor.u32 %v1711, 2147483648
    %v1720 = vxor.u32 %v1712, 2147483648
    %v1721 = vxor.u32 %v1713, 2147483648
    %v1722 = vmul.f32 %v1714, 1.442695
    %v1723 = vpow.pop %v1722
    %v1724 = vmul.f32 %v1715, 1.442695
    %v1725 = vpow.pop %v1724
    %v1726 = vmul.f32 %v1716, 1.442695
    %v1727 = vpow.pop %v1726
    %v1728 = vmul.f32 %v1717, 1.442695
    %v1729 = vpow.pop %v1728
    %v1730 = vmul.f32 %v1718, 1.442695
    %v1731 = vpow.pop %v1730
    %v1732 = vmul.f32 %v1719, 1.442695
    %v1733 = vpow.pop %v1732
    %v1734 = vmul.f32 %v1720, 1.442695
    %v1735 = vpow.pop %v1734
    %v1736 = vmul.f32 %v1721, 1.442695
    %v1737 = vpow.pop %v1736
    %v1738 = vadd.f32 %v1723, 1.0
    %v1739 = vadd.f32 %v1725, 1.0
    %v1740 = vadd.f32 %v1727, 1.0
    %v1741 = vadd.f32 %v1729, 1.0
    %v1742 = vadd.f32 %v1731, 1.0
    %v1743 = vadd.f32 %v1733, 1.0
    %v1744 = vadd.f32 %v1735, 1.0
    %v1745 = vadd.f32 %v1737, 1.0
    %v1746 = vrcp.pop %v1738
    %v1747 = vmul.f32 1.0, %v1746
    %v1748 = vrcp.pop %v1739
    %v1749 = vmul.f32 1.0, %v1748
    %v1750 = vrcp.pop %v1740
    %v1751 = vmul.f32 1.0, %v1750
    %v1752 = vrcp.pop %v1741
    %v1753 = vmul.f32 1.0, %v1752
    %v1754 = vrcp.pop %v1742
    %v1755 = vmul.f32 1.0, %v1754
    %v1756 = vrcp.pop %v1743
    %v1757 = vmul.f32 1.0, %v1756
    %v1758 = vrcp.pop %v1744
    %v1759 = vmul.f32 1.0, %v1758
    %v1760 = vrcp.pop %v1745
    %v1761 = vmul.f32 1.0, %v1760
    %v1762 = vmul.f32 %v191, %v1747
    %v1763 = vmul.f32 %v196, %v1749
    %v1764 = vmul.f32 %v201, %v1751
    %v1765 = vmul.f32 %v206, %v1753
    %v1766 = vmul.f32 %v211, %v1755
    %v1767 = vmul.f32 %v216, %v1757
    %v1768 = vmul.f32 %v221, %v1759
    %v1769 = vmul.f32 %v226, %v1761
    %v1770 = vmax.f32 %v1126, -10.0
    %v1771 = vmax.f32 %v1199, -10.0
    %v1772 = vmax.f32 %v1272, -10.0
    %v1773 = vmax.f32 %v1345, -10.0
    %v1774 = vmax.f32 %v1418, -10.0
    %v1775 = vmax.f32 %v1491, -10.0
    %v1776 = vmax.f32 %v1564, -10.0
    %v1777 = vmax.f32 %v1637, -10.0
    %v1778 = vmin.f32 %v1770, 10.0
    %v1779 = vmin.f32 %v1771, 10.0
    %v1780 = vmin.f32 %v1772, 10.0
    %v1781 = vmin.f32 %v1773, 10.0
    %v1782 = vmin.f32 %v1774, 10.0
    %v1783 = vmin.f32 %v1775, 10.0
    %v1784 = vmin.f32 %v1776, 10.0
    %v1785 = vmin.f32 %v1777, 10.0
    %v1786 = vmax.f32 %v1762, -10.0
    %v1787 = vmax.f32 %v1763, -10.0
    %v1788 = vmax.f32 %v1764, -10.0
    %v1789 = vmax.f32 %v1765, -10.0
    %v1790 = vmax.f32 %v1766, -10.0
    %v1791 = vmax.f32 %v1767, -10.0
    %v1792 = vmax.f32 %v1768, -10.0
    %v1793 = vmax.f32 %v1769, -10.0
    %v1794 = vmin.f32 %v1786, 10.0
    %v1795 = vmin.f32 %v1787, 10.0
    %v1796 = vmin.f32 %v1788, 10.0
    %v1797 = vmin.f32 %v1789, 10.0
    %v1798 = vmin.f32 %v1790, 10.0
    %v1799 = vmin.f32 %v1791, 10.0
    %v1800 = vmin.f32 %v1792, 10.0
    %v1801 = vmin.f32 %v1793, 10.0
    %v1802 = vsel %vm99, %v1778, %v1794
    %v1803 = vsel %vm99, %v1779, %v1795
    %v1804 = vsel %vm99, %v1780, %v1796
    %v1805 = vsel %vm99, %v1781, %v1797
    %v1806 = vsel %vm99, %v1782, %v1798
    %v1807 = vsel %vm99, %v1783, %v1799
    %v1808 = vsel %vm99, %v1784, %v1800
    %v1809 = vsel %vm99, %v1785, %v1801
    %v1810 = vld [vmem:[#allocation8] sm:$0xff]
    %v1811 = vld [vmem:[#allocation8 + $0x8] sm:$0xff]
    %v1812 = vld [vmem:[#allocation8 + $0x10] sm:$0xff]
    %v1813 = vld [vmem:[#allocation8 + $0x18] sm:$0xff]
    %v1814 = vld [vmem:[#allocation8 + $0x20] sm:$0xff]
    %v1815 = vld [vmem:[#allocation8 + $0x28] sm:$0xff]
    %v1816 = vld [vmem:[#allocation8 + $0x30] sm:$0xff]
    %v1817 = vld [vmem:[#allocation8 + $0x38] sm:$0xff]
    %vm1818 = vcmask 523264
    %v1820 = vsel %vm1818, %v1802, 0
    %v1823 = vsel %vm1818, %v1803, 0
    %v1826 = vsel %vm1818, %v1804, 0
    %v1829 = vsel %vm1818, %v1805, 0
    %v1832 = vsel %vm1818, %v1806, 0
    %v1835 = vsel %vm1818, %v1807, 0
    %v1838 = vsel %vm1818, %v1808, 0
    %v1841 = vsel %vm1818, %v1809, 0
    %1843 = vmatprep.subr.mxu0 0.0
    %1844 = vmatpush1.msra.mxu0 %v1810
    %1845 = vmatprep.subr.mxu0 0.0
    %1846 = vmatpush1.msra.mxu0 %v1811
    %1847 = vmatprep.subr.mxu0 0.0
    %1848 = vmatpush1.msra.mxu0 %v1812
    %1849 = vmatprep.subr.mxu0 0.0
    %1850 = vmatpush1.msra.mxu0 %v1813
    %1851 = vmatprep.subr.mxu0 0.0
    %1852 = vmatpush1.msra.mxu0 %v1814
    %1853 = vmatprep.subr.mxu0 0.0
    %1854 = vmatpush1.msra.mxu0 %v1815
    %1855 = vmatprep.subr.mxu0 0.0
    %1856 = vmatpush1.msra.mxu0 %v1816
    %1857 = vmatprep.subr.mxu0 0.0
    %1858 = vmatpush1.msra.mxu0 %v1817
    %1859 = vmatprep.subr.mxu0 0.0
    %1860 = vmatpush1.msra.mxu0 0.0
    %1861 = vmatprep.subr.mxu0 0.0
    %1862 = vmatpush1.msra.mxu0 0.0
    %1863 = vmatprep.subr.mxu0 0.0
    %1864 = vmatpush1.msra.mxu0 0.0
    %1865 = vmatprep.subr.mxu0 0.0
    %1866 = vmatpush1.msra.mxu0 0.0
    %1867 = vmatprep.subr.mxu0 0.0
    %1868 = vmatpush1.msra.mxu0 0.0
    %1869 = vmatprep.subr.mxu0 0.0
    %1870 = vmatpush1.msra.mxu0 0.0
    %1871 = vmatprep.subr.mxu0 0.0
    %1872 = vmatpush1.msra.mxu0 0.0
    %1873 = vmatprep.subr.mxu0 0.0
    %1874 = vmatpush1.msra.mxu0 0.0
    %1875 = vmatprep.subr.mxu0 0.0
    %1876 = vmatpush1.msra.mxu0 0.0
    %1877 = vmatprep.subr.mxu0 0.0
    %1878 = vmatpush1.msra.mxu0 0.0
    %1879 = vmatprep.subr.mxu0 0.0
    %1880 = vmatpush1.msra.mxu0 0.0
    %1881 = vmatprep.subr.mxu0 0.0
    %1882 = vmatpush1.msra.mxu0 0.0
    %1883 = vmatprep.subr.mxu0 0.0
    %1884 = vmatpush1.msra.mxu0 0.0
    %1885 = vmatprep.subr.mxu0 0.0
    %1886 = vmatpush1.msra.mxu0 0.0
    %1887 = vmatprep.subr.mxu0 0.0
    %1888 = vmatpush1.msra.mxu0 0.0
    %1889 = vmatprep.subr.mxu0 0.0
    %1890 = vmatpush1.msra.mxu0 0.0
    %1891 = vmatprep.subr.mxu0 0.0
    %1892 = vmatpush1.msra.mxu0 0.0
    %1893 = vmatprep.subr.mxu0 0.0
    %1894 = vmatpush1.msra.mxu0 0.0
    %1895 = vmatprep.subr.mxu0 0.0
    %1896 = vmatpush1.msra.mxu0 0.0
    %1897 = vmatprep.subr.mxu0 0.0
    %1898 = vmatpush1.msra.mxu0 0.0
    %1899 = vmatprep.subr.mxu0 0.0
    %1900 = vmatpush1.msra.mxu0 0.0
    %1901 = vmatprep.subr.mxu0 0.0
    %1902 = vmatpush1.msra.mxu0 0.0
    %1903 = vmatprep.subr.mxu0 0.0
    %1904 = vmatpush1.msra.mxu0 0.0
    %1905 = vmatprep.subr.mxu0 0.0
    %1906 = vmatpush1.msra.mxu0 0.0
    %1907 = vmatprep.mubr.f32.mxu0 0.0
    %1908 = vmatmul.mubr.f32.gmra.mrb[0].mxu0 %v1820
    %v1909 = vpop.f32.mrb[0].mxu0
    %v1910 = vadd.f32 0.0, %v1909
    %v1911 = vpop.f32.mrb[0].mxu0
    %1912 = vmatprep.mubr.f32.mxu0 0.0
    %1913 = vmatmul.mubr.f32.gmra.mrb[0].mxu0 %v1823
    %v1914 = vpop.f32.mrb[0].mxu0
    %v1915 = vadd.f32 0.0, %v1914
    %v1916 = vpop.f32.mrb[0].mxu0
    %1917 = vmatprep.mubr.f32.mxu0 0.0
    %1918 = vmatmul.mubr.f32.gmra.mrb[0].mxu0 %v1826
    %v1919 = vpop.f32.mrb[0].mxu0
    %v1920 = vadd.f32 0.0, %v1919
    %v1921 = vpop.f32.mrb[0].mxu0
    %1922 = vmatprep.mubr.f32.mxu0 0.0
    %1923 = vmatmul.mubr.f32.gmra.mrb[0].mxu0 %v1829
    %v1924 = vpop.f32.mrb[0].mxu0
    %v1925 = vadd.f32 0.0, %v1924
    %v1926 = vpop.f32.mrb[0].mxu0
    %1927 = vmatprep.mubr.f32.mxu0 0.0
    %1928 = vmatmul.mubr.f32.gmra.mrb[0].mxu0 %v1832
    %v1929 = vpop.f32.mrb[0].mxu0
    %v1930 = vadd.f32 0.0, %v1929
    %v1931 = vpop.f32.mrb[0].mxu0
    %1932 = vmatprep.mubr.f32.mxu0 0.0
    %1933 = vmatmul.mubr.f32.gmra.mrb[0].mxu0 %v1835
    %v1934 = vpop.f32.mrb[0].mxu0
    %v1935 = vadd.f32 0.0, %v1934
    %v1936 = vpop.f32.mrb[0].mxu0
    %1937 = vmatprep.mubr.f32.mxu0 0.0
    %1938 = vmatmul.mubr.f32.gmra.mrb[0].mxu0 %v1838
    %v1939 = vpop.f32.mrb[0].mxu0
    %v1940 = vadd.f32 0.0, %v1939
    %v1941 = vpop.f32.mrb[0].mxu0
    %1942 = vmatprep.mubr.f32.mxu0 0.0
    %1943 = vmatmul.mubr.f32.gmra.mrb[0].mxu0 %v1841
    %v1944 = vpop.f32.mrb[0].mxu0
    %v1945 = vadd.f32 0.0, %v1944
    %v1946 = vpop.f32.mrb[0].mxu0
    %1947 = vdwg.mxu0
    %v1948 = vld [vmem:[#allocation10] sm:$0xff]
    %v1949 = vld [vmem:[#allocation10 + $0x8] sm:$0xff]
    %v1950 = vld [vmem:[#allocation10 + $0x10] sm:$0xff]
    %v1951 = vld [vmem:[#allocation10 + $0x18] sm:$0xff]
    %v1952 = vld [vmem:[#allocation10 + $0x20] sm:$0xff]
    %v1953 = vld [vmem:[#allocation10 + $0x28] sm:$0xff]
    %v1954 = vld [vmem:[#allocation10 + $0x30] sm:$0xff]
    %v1955 = vld [vmem:[#allocation10 + $0x38] sm:$0xff]
    %1964 = vrot.lane.b32.xlu0 %v1910, 96
    %v1965 = vpop.permute.xlu0 %1964
    %1966 = vrot.lane.b32.xlu0 %v1915, 96
    %v1967 = vpop.permute.xlu0 %1966
    %1968 = vrot.lane.b32.xlu0 %v1920, 96
    %v1969 = vpop.permute.xlu0 %1968
    %1970 = vrot.lane.b32.xlu0 %v1925, 96
    %v1971 = vpop.permute.xlu0 %1970
    %1972 = vrot.lane.b32.xlu0 %v1930, 96
    %v1973 = vpop.permute.xlu0 %1972
    %1974 = vrot.lane.b32.xlu0 %v1935, 96
    %v1975 = vpop.permute.xlu0 %1974
    %1976 = vrot.lane.b32.xlu0 %v1940, 96
    %v1977 = vpop.permute.xlu0 %1976
    %1978 = vrot.lane.b32.xlu0 %v1945, 96
    %v1979 = vpop.permute.xlu0 %1978
    %v1989 = vsel %vm1818, %v1948, 0
    %v1992 = vsel %vm1818, %v1949, 0
    %v1995 = vsel %vm1818, %v1950, 0
    %v1998 = vsel %vm1818, %v1951, 0
    %v2001 = vsel %vm1818, %v1952, 0
    %v2004 = vsel %vm1818, %v1953, 0
    %v2007 = vsel %vm1818, %v1954, 0
    %v2010 = vsel %vm1818, %v1955, 0
    %2012 = vmatprep.subr.mxu0 0.0
    %2013 = vmatpush1.msra.mxu0 %v1910
    %2014 = vmatprep.subr.mxu0 0.0
    %2015 = vmatpush1.msra.mxu0 %v1915
    %2016 = vmatprep.subr.mxu0 0.0
    %2017 = vmatpush1.msra.mxu0 %v1920
    %2018 = vmatprep.subr.mxu0 0.0
    %2019 = vmatpush1.msra.mxu0 %v1925
    %2020 = vmatprep.subr.mxu0 0.0
    %2021 = vmatpush1.msra.mxu0 %v1930
    %2022 = vmatprep.subr.mxu0 0.0
    %2023 = vmatpush1.msra.mxu0 %v1935
    %2024 = vmatprep.subr.mxu0 0.0
    %2025 = vmatpush1.msra.mxu0 %v1940
    %2026 = vmatprep.subr.mxu0 0.0
    %2027 = vmatpush1.msra.mxu0 %v1945
    %2028 = vmatprep.subr.mxu0 0.0
    %2029 = vmatpush1.msra.mxu0 0.0
    %2030 = vmatprep.subr.mxu0 0.0
    %2031 = vmatpush1.msra.mxu0 0.0
    %2032 = vmatprep.subr.mxu0 0.0
    %2033 = vmatpush1.msra.mxu0 0.0
    %2034 = vmatprep.subr.mxu0 0.0
    %2035 = vmatpush1.msra.mxu0 0.0
    %2036 = vmatprep.subr.mxu0 0.0
    %2037 = vmatpush1.msra.mxu0 0.0
    %2038 = vmatprep.subr.mxu0 0.0
    %2039 = vmatpush1.msra.mxu0 0.0
    %2040 = vmatprep.subr.mxu0 0.0
    %2041 = vmatpush1.msra.mxu0 0.0
    %2042 = vmatprep.subr.mxu0 0.0
    %2043 = vmatpush1.msra.mxu0 0.0
    %2044 = vmatprep.subr.mxu0 0.0
    %2045 = vmatpush1.msra.mxu0 0.0
    %2046 = vmatprep.subr.mxu0 0.0
    %2047 = vmatpush1.msra.mxu0 0.0
    %2048 = vmatprep.subr.mxu0 0.0
    %2049 = vmatpush1.msra.mxu0 0.0
    %2050 = vmatprep.subr.mxu0 0.0
    %2051 = vmatpush1.msra.mxu0 0.0
    %2052 = vmatprep.subr.mxu0 0.0
    %2053 = vmatpush1.msra.mxu0 0.0
    %2054 = vmatprep.subr.mxu0 0.0
    %2055 = vmatpush1.msra.mxu0 0.0
    %2056 = vmatprep.subr.mxu0 0.0
    %2057 = vmatpush1.msra.mxu0 0.0
    %2058 = vmatprep.subr.mxu0 0.0
    %2059 = vmatpush1.msra.mxu0 0.0
    %2060 = vmatprep.subr.mxu0 0.0
    %2061 = vmatpush1.msra.mxu0 0.0
    %2062 = vmatprep.subr.mxu0 0.0
    %2063 = vmatpush1.msra.mxu0 0.0
    %2064 = vmatprep.subr.mxu0 0.0
    %2065 = vmatpush1.msra.mxu0 0.0
    %2066 = vmatprep.subr.mxu0 0.0
    %2067 = vmatpush1.msra.mxu0 0.0
    %2068 = vmatprep.subr.mxu0 0.0
    %2069 = vmatpush1.msra.mxu0 0.0
    %2070 = vmatprep.subr.mxu0 0.0
    %2071 = vmatpush1.msra.mxu0 0.0
    %2072 = vmatprep.subr.mxu0 0.0
    %2073 = vmatpush1.msra.mxu0 0.0
    %2074 = vmatprep.subr.mxu0 0.0
    %2075 = vmatpush1.msra.mxu0 0.0
    %2076 = vmatprep.mubr.f32.mxu0 0.0
    %2077 = vmatmul.mubr.f32.gmra.mrb[0].mxu0 %v1989
    %v2078 = vpop.f32.mrb[0].mxu0
    %v2079 = vadd.f32 %v1965, %v2078
    %v2080 = vpop.f32.mrb[0].mxu0
    %2081 = vmatprep.mubr.f32.mxu0 0.0
    %2082 = vmatmul.mubr.f32.gmra.mrb[0].mxu0 %v1992
    %v2083 = vpop.f32.mrb[0].mxu0
    %v2084 = vadd.f32 %v1967, %v2083
    %v2085 = vpop.f32.mrb[0].mxu0
    %2086 = vmatprep.mubr.f32.mxu0 0.0
    %2087 = vmatmul.mubr.f32.gmra.mrb[0].mxu0 %v1995
    %v2088 = vpop.f32.mrb[0].mxu0
    %v2089 = vadd.f32 %v1969, %v2088
    %v2090 = vpop.f32.mrb[0].mxu0
    %2091 = vmatprep.mubr.f32.mxu0 0.0
    %2092 = vmatmul.mubr.f32.gmra.mrb[0].mxu0 %v1998
    %v2093 = vpop.f32.mrb[0].mxu0
    %v2094 = vadd.f32 %v1971, %v2093
    %v2095 = vpop.f32.mrb[0].mxu0
    %2096 = vmatprep.mubr.f32.mxu0 0.0
    %2097 = vmatmul.mubr.f32.gmra.mrb[0].mxu0 %v2001
    %v2098 = vpop.f32.mrb[0].mxu0
    %v2099 = vadd.f32 %v1973, %v2098
    %v2100 = vpop.f32.mrb[0].mxu0
    %2101 = vmatprep.mubr.f32.mxu0 0.0
    %2102 = vmatmul.mubr.f32.gmra.mrb[0].mxu0 %v2004
    %v2103 = vpop.f32.mrb[0].mxu0
    %v2104 = vadd.f32 %v1975, %v2103
    %v2105 = vpop.f32.mrb[0].mxu0
    %2106 = vmatprep.mubr.f32.mxu0 0.0
    %2107 = vmatmul.mubr.f32.gmra.mrb[0].mxu0 %v2007
    %v2108 = vpop.f32.mrb[0].mxu0
    %v2109 = vadd.f32 %v1977, %v2108
    %v2110 = vpop.f32.mrb[0].mxu0
    %2111 = vmatprep.mubr.f32.mxu0 0.0
    %2112 = vmatmul.mubr.f32.gmra.mrb[0].mxu0 %v2010
    %v2113 = vpop.f32.mrb[0].mxu0
    %v2114 = vadd.f32 %v1979, %v2113
    %v2115 = vpop.f32.mrb[0].mxu0
    %2116 = vdwg.mxu0
    %2117 = vst.msk [vmem:[#allocation11] sm:$0xff] %vm99, %v2079
    %2118 = vst.msk [vmem:[#allocation11 + $0x8] sm:$0xff] %vm99, %v2084
    %2119 = vst.msk [vmem:[#allocation11 + $0x10] sm:$0xff] %vm99, %v2089
    %2120 = vst.msk [vmem:[#allocation11 + $0x18] sm:$0xff] %vm99, %v2094
    %2121 = vst.msk [vmem:[#allocation11 + $0x20] sm:$0xff] %vm99, %v2099
    %2122 = vst.msk [vmem:[#allocation11 + $0x28] sm:$0xff] %vm99, %v2104
    %2123 = vst.msk [vmem:[#allocation11 + $0x30] sm:$0xff] %vm99, %v2109
    %2124 = vst.msk [vmem:[#allocation11 + $0x38] sm:$0xff] %vm99, %v2114
    // Predicated region
    $region42: #{tpu_custom_call.1} parent=1 // pred_check
      _
    $region43: #{tpu_custom_call.1} parent=1 // pred_check_branch
      %2126 = sbr.rel (0) target = $region45
    $region44: #{tpu_custom_call.1} parent=1 // pred_region
      %s2128 = ssub.s32 1024, 1024
      %2129 = vsyncadd [#allocation4], %s2128
      %s2130 = sshll.u32 [#allocation11], 4
      %s2131 = int_to_ptr.vmem [resolvable:$true] %s2130
      %2136 = dma.vmem_to_hbm [thread:$0]  %s2131, 1024, %s5, [#allocation4], 128, 128, 8
    $region45: #{tpu_custom_call.1} parent=1 // pred_fallthru
      _
    // Predicated region
    $region46: #{tpu_custom_call.1} parent=1 // pred_check
      _
    $region47: #{tpu_custom_call.1} parent=1 // pred_check_branch
      %2138 = sbr.rel (0) target = $region49
    $region48: #{tpu_custom_call.1} parent=1 // pred_region
      %2139 = dma.done [#allocation4], 1024
    $region49: #{tpu_custom_call.1} parent=1 // pred_fallthru
      _
    %2140 = vsyncpa [#allocation3], 1
    %2141 = vsyncpa [#allocation6], 1
    %2142 = vsyncpa [#allocation9], 1
    %2143 = vsyncpa [#allocation4], 1

</llo_original>
